<compile_context>
chip_gen: v7x
topology: tpu7x:2x2x1
jax: 0.10.0
libtpu: 0.0.40
codegen_flags: <defaults>
</compile_context>

<pallas_src>
import functools

import jax
import jax.numpy as jnp
from jax import lax
from jax.experimental import pallas as pl
from jax.experimental.pallas import tpu as pltpu


def _crop_rotate_pad_kernel(top_ref, left_ref, cos_ref, sin_ref,   # scalar prefetch (SMEM)
                            coords_ref, img_ref, out_ref,          # VMEM tiles
                            *, W, tgt_h, tgt_w, HWp):
    b = pl.program_id(0)
    cx = (tgt_w - 1) * 0.5
    cy = (tgt_h - 1) * 0.5

    cos_t = cos_ref[b]
    sin_t = sin_ref[b]
    top = top_ref[b]
    left = left_ref[b]

    # Batch-invariant per-output-pixel precompute (hoisted to the wrapper):
    #   row 0: x - cx   (crop-centered x of the output pixel inside the pad canvas)
    #   row 1: y - cy
    #   row 2: 1.0 where the output pixel lies inside the centered crop canvas
    xf = coords_ref[pl.ds(0, 1), :]        # (1, HWp) f32
    yf = coords_ref[pl.ds(1, 1), :]        # (1, HWp) f32
    insf = coords_ref[pl.ds(2, 1), :]      # (1, HWp) f32

    # Inverse rotation about the crop center (torchvision F.rotate with
    # align_corners=False; cos/sin of radians(-angle) precomputed in wrapper).
    xs = cos_t * xf + sin_t * yf + cx      # source x in crop coords
    ys = -sin_t * xf + cos_t * yf + cy     # source y in crop coords

    x0f = jnp.floor(xs)
    y0f = jnp.floor(ys)
    x0 = x0f.astype(jnp.int32)
    y0 = y0f.astype(jnp.int32)
    x1 = x0 + 1
    y1 = y0 + 1
    wx1 = xs - x0f
    wx0 = 1.0 - wx1
    wy1 = ys - y0f
    wy0 = 1.0 - wy1

    # Column iota over the source (contraction) axis; broadcast against the
    # (1, HWp) per-output-pixel source indices -> no (HWp, HWp) int buffer.
    q = lax.broadcasted_iota(jnp.int32, (HWp, 1), 0)

    S = None      # (HWp_src, HWp_out) weighted one-hot sampling matrix
    msum = None   # grid_sample of an all-ones image (torchvision fill mask)
    corners = (
        (y0, x0, wy0 * wx0),
        (y0, x1, wy0 * wx1),
        (y1, x0, wy1 * wx0),
        (y1, x1, wy1 * wx1),
    )
    for yk, xk, wk in corners:
        inb = (xk >= 0) & (xk < tgt_w) & (yk >= 0) & (yk < tgt_h)
        wv = jnp.where(inb, wk, 0.0)                 # zero padding of grid_sample
        # Clamp then shift into the original image (crop offset). The weight is
        # exactly zero whenever the clamp mattered, so the index value there is
        # irrelevant (but always in-bounds).
        yi = jnp.clip(yk, 0, tgt_h - 1) + top
        xi = jnp.clip(xk, 0, tgt_w - 1) + left
        idx = yi * W + xi                            # (1, HWp) flat source index
        contrib = jnp.where(q == idx, wv, 0.0)       # (HWp, HWp), no astype/mul
        S = contrib if S is None else S + contrib
        msum = wv if msum is None else msum + wv

    img = img_ref[0].astype(jnp.float32)             # (C, HWp)
    out = jnp.dot(img, S, preferred_element_type=jnp.float32)   # (C, HWp)

    # fill=0 bilinear handling (out * sampled-ones-mask) + centered-pad mask.
    out_ref[0] = (out * (msum * insf)).astype(out_ref.dtype)


def crop80_rotate_pad_batch(x, key, degrees=30.0, crop_scale=0.8):
    """x: (B, C, H, W) float array. Returns (B, C, H, W), same dtype."""
    B, C, H, W = x.shape
    tgt_h = int(H * crop_scale)
    tgt_w = int(W * crop_scale)

    # Randomness of the torch module, drawn deterministically with jax.random.
    k_top, k_left, k_ang = jax.random.split(key, 3)
    tops = jax.random.randint(k_top, (B,), 0, H - tgt_h + 1, dtype=jnp.int32)
    lefts = jax.random.randint(k_left, (B,), 0, W - tgt_w + 1, dtype=jnp.int32)
    angles = jax.random.uniform(k_ang, (B,), minval=-degrees, maxval=degrees,
                                dtype=jnp.float32)
    rot = jnp.deg2rad(-angles)            # F.rotate passes -angle to the inverse map
    coss = jnp.cos(rot).astype(jnp.float32)
    sins = jnp.sin(rot).astype(jnp.float32)

    HW = H * W
    HWp = ((HW + 127) // 128) * 128       # lane-dense last dim (multiple of 128)

    pad_top = (H - tgt_h) // 2
    pad_left = (W - tgt_w) // 2
    cx = (tgt_w - 1) * 0.5
    cy = (tgt_h - 1) * 0.5

    # Batch-invariant per-pixel precompute, done once on host/XLA side.
    p = jnp.arange(HWp, dtype=jnp.int32)
    y = p // W - pad_top
    xcol = p % W - pad_left
    inside = (y >= 0) & (y < tgt_h) & (xcol >= 0) & (xcol < tgt_w) & (p < HW)
    coords = jnp.stack(
        [xcol.astype(jnp.float32) - cx,
         y.astype(jnp.float32) - cy,
         inside.astype(jnp.float32)], axis=0)        # (3, HWp) f32

    x_flat = x.reshape(B, C, HW)
    if HWp != HW:
        x_flat = jnp.pad(x_flat, ((0, 0), (0, 0), (0, HWp - HW)))

    kernel = functools.partial(_crop_rotate_pad_kernel,
                               W=W, tgt_h=tgt_h, tgt_w=tgt_w, HWp=HWp)

    # Generous scoped-VMEM budget for S + temporaries, capped below v7x's 64 MiB.
    vmem_limit = int(min(64 * 2**20, max(32 * 2**20, 12 * HWp * HWp * 4)))

    out_flat = pl.pallas_call(
        kernel,
        out_shape=jax.ShapeDtypeStruct((B, C, HWp), x.dtype),
        grid_spec=pltpu.PrefetchScalarGridSpec(
            num_scalar_prefetch=4,
            grid=(B,),
            in_specs=[
                pl.BlockSpec((3, HWp), lambda b, *_: (0, 0)),       # resident coords
                pl.BlockSpec((1, C, HWp), lambda b, *_: (b, 0, 0)),  # per-image slab
            ],
            out_specs=pl.BlockSpec((1, C, HWp), lambda b, *_: (b, 0, 0)),
        ),
        compiler_params=pltpu.CompilerParams(
            dimension_semantics=("parallel",),        # images are independent (v7x 2 TCs)
            vmem_limit_bytes=vmem_limit),
    )(tops, lefts, coss, sins, coords, x_flat)

    if HWp != HW:
        out_flat = out_flat[..., :HW]
    return out_flat.reshape(B, C, H, W)


if __name__ == "__main__":
    key = jax.random.PRNGKey(0)
    k_img, k_aug = jax.random.split(key)

    B, C, H, W = 2, 4, 16, 16
    x = jax.random.normal(k_img, (B, C, H, W), dtype=jnp.float32)

    out = crop80_rotate_pad_batch(x, k_aug, degrees=30.0, crop_scale=0.8)
    out = jax.block_until_ready(out)

    assert out.shape == (B, C, H, W)
    assert out.dtype == x.dtype
    assert bool(jnp.all(jnp.isfinite(out)))
    print("KERNEL_OK")
</pallas_src>

<mosaic_0001>
module attributes {stable_mosaic.version = 11 : i64} {
  func.func @_crop_rotate_pad_kernel(%arg0: i32, %arg1: memref<2xi32, #tpu.memory_space<smem>>, %arg2: memref<2xi32, #tpu.memory_space<smem>>, %arg3: memref<2xf32, #tpu.memory_space<smem>>, %arg4: memref<2xf32, #tpu.memory_space<smem>>, %arg5: memref<3x256xf32, #tpu.memory_space<vmem>>, %arg6: memref<1x4x256xf32, #tpu.memory_space<vmem>>, %arg7: memref<1x4x256xf32, #tpu.memory_space<vmem>>) attributes {dimension_semantics = [#tpu.dimension_semantics<parallel>], iteration_bounds = array<i64: 2>, scalar_prefetch = 4 : i64, scratch_operands = 0 : i64, tpu.core_type = #tpu.core_type<tc>, window_params = [{pipeline_mode = #tpu.pipeline_mode<synchronous>, transform_indices = @transform_0, window_bounds = array<i64: 3, 256>}, {transform_indices = @transform_1, window_bounds = array<i64: 1, 4, 256>}, {transform_indices = @transform_2, window_bounds = array<i64: 1, 4, 256>}]} {
    %0 = arith.index_cast %arg0 : i32 to index
    %1 = memref.load %arg3[%0] : memref<2xf32, #tpu.memory_space<smem>>
    %2 = arith.index_cast %arg0 : i32 to index
    %3 = memref.load %arg4[%2] : memref<2xf32, #tpu.memory_space<smem>>
    %4 = arith.index_cast %arg0 : i32 to index
    %5 = memref.load %arg1[%4] : memref<2xi32, #tpu.memory_space<smem>>
    %6 = arith.index_cast %arg0 : i32 to index
    %7 = memref.load %arg2[%6] : memref<2xi32, #tpu.memory_space<smem>>
    %c0 = arith.constant 0 : index
    %c0_0 = arith.constant 0 : index
    %8 = vector.load %arg5[%c0, %c0_0] : memref<3x256xf32, #tpu.memory_space<vmem>>, vector<1x256xf32>
    %c1 = arith.constant 1 : index
    %c0_1 = arith.constant 0 : index
    %9 = vector.load %arg5[%c1, %c0_1] : memref<3x256xf32, #tpu.memory_space<vmem>>, vector<1x256xf32>
    %c2 = arith.constant 2 : index
    %c0_2 = arith.constant 0 : index
    %10 = vector.load %arg5[%c2, %c0_2] : memref<3x256xf32, #tpu.memory_space<vmem>>, vector<1x256xf32>
    %11 = vector.broadcast %1 : f32 to vector<1x256xf32>
    %12 = arith.mulf %11, %8 : vector<1x256xf32>
    %13 = vector.broadcast %3 : f32 to vector<1x256xf32>
    %14 = arith.mulf %13, %9 : vector<1x256xf32>
    %15 = arith.addf %12, %14 : vector<1x256xf32>
    %cst = arith.constant 5.500000e+00 : f32
    %16 = vector.broadcast %cst : f32 to vector<1x256xf32>
    %17 = arith.addf %15, %16 : vector<1x256xf32>
    %cst_3 = arith.constant 0.000000e+00 : f32
    %18 = arith.subf %cst_3, %3 : f32
    %19 = vector.broadcast %18 : f32 to vector<1x256xf32>
    %20 = arith.mulf %19, %8 : vector<1x256xf32>
    %21 = vector.broadcast %1 : f32 to vector<1x256xf32>
    %22 = arith.mulf %21, %9 : vector<1x256xf32>
    %23 = arith.addf %20, %22 : vector<1x256xf32>
    %cst_4 = arith.constant 5.500000e+00 : f32
    %24 = vector.broadcast %cst_4 : f32 to vector<1x256xf32>
    %25 = arith.addf %23, %24 : vector<1x256xf32>
    %26 = math.floor %17 : vector<1x256xf32>
    %27 = math.floor %25 : vector<1x256xf32>
    %28 = arith.fptosi %26 : vector<1x256xf32> to vector<1x256xi32>
    %29 = arith.fptosi %27 : vector<1x256xf32> to vector<1x256xi32>
    %c1_i32 = arith.constant 1 : i32
    %30 = vector.broadcast %c1_i32 : i32 to vector<1x256xi32>
    %31 = arith.addi %28, %30 : vector<1x256xi32>
    %c1_i32_5 = arith.constant 1 : i32
    %32 = vector.broadcast %c1_i32_5 : i32 to vector<1x256xi32>
    %33 = arith.addi %29, %32 : vector<1x256xi32>
    %34 = arith.subf %17, %26 : vector<1x256xf32>
    %cst_6 = arith.constant 1.000000e+00 : f32
    %35 = vector.broadcast %cst_6 : f32 to vector<1x256xf32>
    %36 = arith.subf %35, %34 : vector<1x256xf32>
    %37 = arith.subf %25, %27 : vector<1x256xf32>
    %cst_7 = arith.constant 1.000000e+00 : f32
    %38 = vector.broadcast %cst_7 : f32 to vector<1x256xf32>
    %39 = arith.subf %38, %37 : vector<1x256xf32>
    %40 = tpu.iota {dimensions = array<i32: 0>} : vector<256x1xi32>
    %41 = arith.mulf %39, %36 : vector<1x256xf32>
    %42 = arith.mulf %39, %34 : vector<1x256xf32>
    %43 = arith.mulf %37, %36 : vector<1x256xf32>
    %44 = arith.mulf %37, %34 : vector<1x256xf32>
    %c0_i32 = arith.constant 0 : i32
    %45 = vector.broadcast %c0_i32 : i32 to vector<1x256xi32>
    %46 = arith.cmpi sge, %28, %45 : vector<1x256xi32>
    %c12_i32 = arith.constant 12 : i32
    %47 = vector.broadcast %c12_i32 : i32 to vector<1x256xi32>
    %48 = arith.cmpi slt, %28, %47 : vector<1x256xi32>
    %49 = arith.andi %46, %48 : vector<1x256xi1>
    %c0_i32_8 = arith.constant 0 : i32
    %50 = vector.broadcast %c0_i32_8 : i32 to vector<1x256xi32>
    %51 = arith.cmpi sge, %29, %50 : vector<1x256xi32>
    %52 = arith.andi %49, %51 : vector<1x256xi1>
    %c12_i32_9 = arith.constant 12 : i32
    %53 = vector.broadcast %c12_i32_9 : i32 to vector<1x256xi32>
    %54 = arith.cmpi slt, %29, %53 : vector<1x256xi32>
    %55 = arith.andi %52, %54 : vector<1x256xi1>
    %cst_10 = arith.constant 0.000000e+00 : f32
    %56 = vector.broadcast %cst_10 : f32 to vector<1x256xf32>
    %57 = arith.select %55, %41, %56 : vector<1x256xi1>, vector<1x256xf32>
    %c0_i32_11 = arith.constant 0 : i32
    %c11_i32 = arith.constant 11 : i32
    %58 = vector.broadcast %c0_i32_11 : i32 to vector<1x256xi32>
    %59 = arith.maxsi %58, %29 : vector<1x256xi32>
    %60 = vector.broadcast %c11_i32 : i32 to vector<1x256xi32>
    %61 = arith.minsi %60, %59 : vector<1x256xi32>
    %62 = vector.broadcast %5 : i32 to vector<1x256xi32>
    %63 = arith.addi %61, %62 : vector<1x256xi32>
    %c0_i32_12 = arith.constant 0 : i32
    %c11_i32_13 = arith.constant 11 : i32
    %64 = vector.broadcast %c0_i32_12 : i32 to vector<1x256xi32>
    %65 = arith.maxsi %64, %28 : vector<1x256xi32>
    %66 = vector.broadcast %c11_i32_13 : i32 to vector<1x256xi32>
    %67 = arith.minsi %66, %65 : vector<1x256xi32>
    %68 = vector.broadcast %7 : i32 to vector<1x256xi32>
    %69 = arith.addi %67, %68 : vector<1x256xi32>
    %c16_i32 = arith.constant 16 : i32
    %70 = vector.broadcast %c16_i32 : i32 to vector<1x256xi32>
    %71 = arith.muli %63, %70 : vector<1x256xi32>
    %72 = arith.addi %71, %69 : vector<1x256xi32>
    %73 = vector.broadcast %40 : vector<256x1xi32> to vector<256x256xi32>
    %74 = vector.broadcast %72 : vector<1x256xi32> to vector<256x256xi32>
    %75 = arith.cmpi eq, %73, %74 : vector<256x256xi32>
    %cst_14 = arith.constant 0.000000e+00 : f32
    %76 = vector.shape_cast %57 : vector<1x256xf32> to vector<1x256xf32>
    %77 = vector.broadcast %76 : vector<1x256xf32> to vector<256x256xf32>
    %78 = vector.broadcast %cst_14 : f32 to vector<256x256xf32>
    %79 = arith.select %75, %77, %78 : vector<256x256xi1>, vector<256x256xf32>
    %c0_i32_15 = arith.constant 0 : i32
    %80 = vector.broadcast %c0_i32_15 : i32 to vector<1x256xi32>
    %81 = arith.cmpi sge, %31, %80 : vector<1x256xi32>
    %c12_i32_16 = arith.constant 12 : i32
    %82 = vector.broadcast %c12_i32_16 : i32 to vector<1x256xi32>
    %83 = arith.cmpi slt, %31, %82 : vector<1x256xi32>
    %84 = arith.andi %81, %83 : vector<1x256xi1>
    %c0_i32_17 = arith.constant 0 : i32
    %85 = vector.broadcast %c0_i32_17 : i32 to vector<1x256xi32>
    %86 = arith.cmpi sge, %29, %85 : vector<1x256xi32>
    %87 = arith.andi %84, %86 : vector<1x256xi1>
    %c12_i32_18 = arith.constant 12 : i32
    %88 = vector.broadcast %c12_i32_18 : i32 to vector<1x256xi32>
    %89 = arith.cmpi slt, %29, %88 : vector<1x256xi32>
    %90 = arith.andi %87, %89 : vector<1x256xi1>
    %cst_19 = arith.constant 0.000000e+00 : f32
    %91 = vector.broadcast %cst_19 : f32 to vector<1x256xf32>
    %92 = arith.select %90, %42, %91 : vector<1x256xi1>, vector<1x256xf32>
    %c0_i32_20 = arith.constant 0 : i32
    %c11_i32_21 = arith.constant 11 : i32
    %93 = vector.broadcast %c0_i32_20 : i32 to vector<1x256xi32>
    %94 = arith.maxsi %93, %29 : vector<1x256xi32>
    %95 = vector.broadcast %c11_i32_21 : i32 to vector<1x256xi32>
    %96 = arith.minsi %95, %94 : vector<1x256xi32>
    %97 = vector.broadcast %5 : i32 to vector<1x256xi32>
    %98 = arith.addi %96, %97 : vector<1x256xi32>
    %c0_i32_22 = arith.constant 0 : i32
    %c11_i32_23 = arith.constant 11 : i32
    %99 = vector.broadcast %c0_i32_22 : i32 to vector<1x256xi32>
    %100 = arith.maxsi %99, %31 : vector<1x256xi32>
    %101 = vector.broadcast %c11_i32_23 : i32 to vector<1x256xi32>
    %102 = arith.minsi %101, %100 : vector<1x256xi32>
    %103 = vector.broadcast %7 : i32 to vector<1x256xi32>
    %104 = arith.addi %102, %103 : vector<1x256xi32>
    %c16_i32_24 = arith.constant 16 : i32
    %105 = vector.broadcast %c16_i32_24 : i32 to vector<1x256xi32>
    %106 = arith.muli %98, %105 : vector<1x256xi32>
    %107 = arith.addi %106, %104 : vector<1x256xi32>
    %108 = vector.broadcast %40 : vector<256x1xi32> to vector<256x256xi32>
    %109 = vector.broadcast %107 : vector<1x256xi32> to vector<256x256xi32>
    %110 = arith.cmpi eq, %108, %109 : vector<256x256xi32>
    %cst_25 = arith.constant 0.000000e+00 : f32
    %111 = vector.shape_cast %92 : vector<1x256xf32> to vector<1x256xf32>
    %112 = vector.broadcast %111 : vector<1x256xf32> to vector<256x256xf32>
    %113 = vector.broadcast %cst_25 : f32 to vector<256x256xf32>
    %114 = arith.select %110, %112, %113 : vector<256x256xi1>, vector<256x256xf32>
    %115 = arith.addf %79, %114 : vector<256x256xf32>
    %116 = arith.addf %57, %92 : vector<1x256xf32>
    %c0_i32_26 = arith.constant 0 : i32
    %117 = vector.broadcast %c0_i32_26 : i32 to vector<1x256xi32>
    %118 = arith.cmpi sge, %28, %117 : vector<1x256xi32>
    %c12_i32_27 = arith.constant 12 : i32
    %119 = vector.broadcast %c12_i32_27 : i32 to vector<1x256xi32>
    %120 = arith.cmpi slt, %28, %119 : vector<1x256xi32>
    %121 = arith.andi %118, %120 : vector<1x256xi1>
    %c0_i32_28 = arith.constant 0 : i32
    %122 = vector.broadcast %c0_i32_28 : i32 to vector<1x256xi32>
    %123 = arith.cmpi sge, %33, %122 : vector<1x256xi32>
    %124 = arith.andi %121, %123 : vector<1x256xi1>
    %c12_i32_29 = arith.constant 12 : i32
    %125 = vector.broadcast %c12_i32_29 : i32 to vector<1x256xi32>
    %126 = arith.cmpi slt, %33, %125 : vector<1x256xi32>
    %127 = arith.andi %124, %126 : vector<1x256xi1>
    %cst_30 = arith.constant 0.000000e+00 : f32
    %128 = vector.broadcast %cst_30 : f32 to vector<1x256xf32>
    %129 = arith.select %127, %43, %128 : vector<1x256xi1>, vector<1x256xf32>
    %c0_i32_31 = arith.constant 0 : i32
    %c11_i32_32 = arith.constant 11 : i32
    %130 = vector.broadcast %c0_i32_31 : i32 to vector<1x256xi32>
    %131 = arith.maxsi %130, %33 : vector<1x256xi32>
    %132 = vector.broadcast %c11_i32_32 : i32 to vector<1x256xi32>
    %133 = arith.minsi %132, %131 : vector<1x256xi32>
    %134 = vector.broadcast %5 : i32 to vector<1x256xi32>
    %135 = arith.addi %133, %134 : vector<1x256xi32>
    %c0_i32_33 = arith.constant 0 : i32
    %c11_i32_34 = arith.constant 11 : i32
    %136 = vector.broadcast %c0_i32_33 : i32 to vector<1x256xi32>
    %137 = arith.maxsi %136, %28 : vector<1x256xi32>
    %138 = vector.broadcast %c11_i32_34 : i32 to vector<1x256xi32>
    %139 = arith.minsi %138, %137 : vector<1x256xi32>
    %140 = vector.broadcast %7 : i32 to vector<1x256xi32>
    %141 = arith.addi %139, %140 : vector<1x256xi32>
    %c16_i32_35 = arith.constant 16 : i32
    %142 = vector.broadcast %c16_i32_35 : i32 to vector<1x256xi32>
    %143 = arith.muli %135, %142 : vector<1x256xi32>
    %144 = arith.addi %143, %141 : vector<1x256xi32>
    %145 = vector.broadcast %40 : vector<256x1xi32> to vector<256x256xi32>
    %146 = vector.broadcast %144 : vector<1x256xi32> to vector<256x256xi32>
    %147 = arith.cmpi eq, %145, %146 : vector<256x256xi32>
    %cst_36 = arith.constant 0.000000e+00 : f32
    %148 = vector.shape_cast %129 : vector<1x256xf32> to vector<1x256xf32>
    %149 = vector.broadcast %148 : vector<1x256xf32> to vector<256x256xf32>
    %150 = vector.broadcast %cst_36 : f32 to vector<256x256xf32>
    %151 = arith.select %147, %149, %150 : vector<256x256xi1>, vector<256x256xf32>
    %152 = arith.addf %115, %151 : vector<256x256xf32>
    %153 = arith.addf %116, %129 : vector<1x256xf32>
    %c0_i32_37 = arith.constant 0 : i32
    %154 = vector.broadcast %c0_i32_37 : i32 to vector<1x256xi32>
    %155 = arith.cmpi sge, %31, %154 : vector<1x256xi32>
    %c12_i32_38 = arith.constant 12 : i32
    %156 = vector.broadcast %c12_i32_38 : i32 to vector<1x256xi32>
    %157 = arith.cmpi slt, %31, %156 : vector<1x256xi32>
    %158 = arith.andi %155, %157 : vector<1x256xi1>
    %c0_i32_39 = arith.constant 0 : i32
    %159 = vector.broadcast %c0_i32_39 : i32 to vector<1x256xi32>
    %160 = arith.cmpi sge, %33, %159 : vector<1x256xi32>
    %161 = arith.andi %158, %160 : vector<1x256xi1>
    %c12_i32_40 = arith.constant 12 : i32
    %162 = vector.broadcast %c12_i32_40 : i32 to vector<1x256xi32>
    %163 = arith.cmpi slt, %33, %162 : vector<1x256xi32>
    %164 = arith.andi %161, %163 : vector<1x256xi1>
    %cst_41 = arith.constant 0.000000e+00 : f32
    %165 = vector.broadcast %cst_41 : f32 to vector<1x256xf32>
    %166 = arith.select %164, %44, %165 : vector<1x256xi1>, vector<1x256xf32>
    %c0_i32_42 = arith.constant 0 : i32
    %c11_i32_43 = arith.constant 11 : i32
    %167 = vector.broadcast %c0_i32_42 : i32 to vector<1x256xi32>
    %168 = arith.maxsi %167, %33 : vector<1x256xi32>
    %169 = vector.broadcast %c11_i32_43 : i32 to vector<1x256xi32>
    %170 = arith.minsi %169, %168 : vector<1x256xi32>
    %171 = vector.broadcast %5 : i32 to vector<1x256xi32>
    %172 = arith.addi %170, %171 : vector<1x256xi32>
    %c0_i32_44 = arith.constant 0 : i32
    %c11_i32_45 = arith.constant 11 : i32
    %173 = vector.broadcast %c0_i32_44 : i32 to vector<1x256xi32>
    %174 = arith.maxsi %173, %31 : vector<1x256xi32>
    %175 = vector.broadcast %c11_i32_45 : i32 to vector<1x256xi32>
    %176 = arith.minsi %175, %174 : vector<1x256xi32>
    %177 = vector.broadcast %7 : i32 to vector<1x256xi32>
    %178 = arith.addi %176, %177 : vector<1x256xi32>
    %c16_i32_46 = arith.constant 16 : i32
    %179 = vector.broadcast %c16_i32_46 : i32 to vector<1x256xi32>
    %180 = arith.muli %172, %179 : vector<1x256xi32>
    %181 = arith.addi %180, %178 : vector<1x256xi32>
    %182 = vector.broadcast %40 : vector<256x1xi32> to vector<256x256xi32>
    %183 = vector.broadcast %181 : vector<1x256xi32> to vector<256x256xi32>
    %184 = arith.cmpi eq, %182, %183 : vector<256x256xi32>
    %cst_47 = arith.constant 0.000000e+00 : f32
    %185 = vector.shape_cast %166 : vector<1x256xf32> to vector<1x256xf32>
    %186 = vector.broadcast %185 : vector<1x256xf32> to vector<256x256xf32>
    %187 = vector.broadcast %cst_47 : f32 to vector<256x256xf32>
    %188 = arith.select %184, %186, %187 : vector<256x256xi1>, vector<256x256xf32>
    %189 = arith.addf %152, %188 : vector<256x256xf32>
    %190 = arith.addf %153, %166 : vector<1x256xf32>
    %c0_48 = arith.constant 0 : index
    %c0_49 = arith.constant 0 : index
    %c0_50 = arith.constant 0 : index
    %191 = vector.load %arg6[%c0_48, %c0_49, %c0_50] : memref<1x4x256xf32, #tpu.memory_space<vmem>>, vector<1x4x256xf32>
    %192 = vector.shape_cast %191 : vector<1x4x256xf32> to vector<4x256xf32>
    %cst_51 = arith.constant dense<0.000000e+00> : vector<4x256xf32>
    %193 = tpu.matmul %192, %189, %cst_51 {dimension_numbers = #tpu.dot_dimension_numbers<[1], [0], [0], [1], [0, 0, 1, 1], [], []>} : vector<4x256xf32>, vector<256x256xf32>, vector<4x256xf32> -> vector<4x256xf32>
    %194 = arith.mulf %190, %10 : vector<1x256xf32>
    %195 = vector.broadcast %194 : vector<1x256xf32> to vector<4x256xf32>
    %196 = arith.mulf %193, %195 : vector<4x256xf32>
    %c0_52 = arith.constant 0 : index
    %c0_53 = arith.constant 0 : index
    %c0_54 = arith.constant 0 : index
    %197 = vector.load %arg7[%c0_52, %c0_53, %c0_54] : memref<1x4x256xf32, #tpu.memory_space<vmem>>, vector<1x4x256xf32>
    %198 = vector.shape_cast %197 : vector<1x4x256xf32> to vector<4x256xf32>
    %199 = vector.shape_cast %196 : vector<4x256xf32> to vector<1x4x256xf32>
    tpu.vector_store %arg7[%c0_52, %c0_53, %c0_54], %199 {strides = array<i32>} : memref<1x4x256xf32, #tpu.memory_space<vmem>>, vector<1x4x256xf32>,
    return
  }
  func.func @transform_0(%arg0: i32, %arg1: memref<2xi32, #tpu.memory_space<smem>>, %arg2: memref<2xi32, #tpu.memory_space<smem>>, %arg3: memref<2xf32, #tpu.memory_space<smem>>, %arg4: memref<2xf32, #tpu.memory_space<smem>>) -> (i32, i32) {
    %c0_i32 = arith.constant 0 : i32
    %c0_i32_0 = arith.constant 0 : i32
    %c0_i32_1 = arith.constant 0 : i32
    return %c0_i32, %c0_i32_0 : i32, i32
  }
  func.func @transform_1(%arg0: i32, %arg1: memref<2xi32, #tpu.memory_space<smem>>, %arg2: memref<2xi32, #tpu.memory_space<smem>>, %arg3: memref<2xf32, #tpu.memory_space<smem>>, %arg4: memref<2xf32, #tpu.memory_space<smem>>) -> (i32, i32, i32) {
    %c0_i32 = arith.constant 0 : i32
    %c0_i32_0 = arith.constant 0 : i32
    %c0_i32_1 = arith.constant 0 : i32
    return %arg0, %c0_i32, %c0_i32_0 : i32, i32, i32
  }
  func.func @transform_2(%arg0: i32, %arg1: memref<2xi32, #tpu.memory_space<smem>>, %arg2: memref<2xi32, #tpu.memory_space<smem>>, %arg3: memref<2xf32, #tpu.memory_space<smem>>, %arg4: memref<2xf32, #tpu.memory_space<smem>>) -> (i32, i32, i32) {
    %c0_i32 = arith.constant 0 : i32
    %c0_i32_0 = arith.constant 0 : i32
    %c0_i32_1 = arith.constant 0 : i32
    return %arg0, %c0_i32, %c0_i32_0 : i32, i32, i32
  }
}

</mosaic_0001>

<llo_original>
// kernel: tpu_custom_call.1
$region0: #{tpu_custom_call.1}
  #allocation0 [shape = 'u32[]', space=smem, size = 0x4, offset = 0x4, fixed_abs, tag = 'smem constant byte address 0x4 - core index']
  #allocation1 [shape = 'u32[144,128]{1,0:T(1,128)}', space=vmem, size = 0x12000, scoped, tag = 'internal scratch']
  #allocation2 [shape = 's32[1]{0}', space=sflag, size = 0x4, scoped, tag = 'scoped memory for tpu_custom_call.1']
  #allocation3 [shape = 'u8[512]{0}', space=smem, size = 0x200, scoped, tag = 'prefetched SMEM operand 0']
  #allocation4 [shape = 'u8[512]{0}', space=smem, size = 0x200, scoped, tag = 'prefetched SMEM operand 1']
  #allocation5 [shape = 'u8[512]{0}', space=smem, size = 0x200, scoped, tag = 'prefetched SMEM operand 2']
  #allocation6 [shape = 'u8[512]{0}', space=smem, size = 0x200, scoped, tag = 'prefetched SMEM operand 3']
  %s0 = inlined_call_operand.hbm [shape: s32[2], index: 0, kind: input, shape index: {}]
  %s1 = inlined_call_operand.vmem [shape: s32[2], index: 1, kind: input, shape index: {}]
  %s2 = inlined_call_operand.vmem [shape: f32[2], index: 2, kind: input, shape index: {}]
  %s3 = inlined_call_operand.hbm [shape: f32[2], index: 3, kind: input, shape index: {}]
  %s4 = inlined_call_operand.hbm [shape: f32[3,256], index: 4, kind: input, shape index: {}]
  %s5 = inlined_call_operand.vmem [shape: f32[2,4,256], index: 5, kind: input, shape index: {}]
  %s6 = inlined_call_operand.hbm [shape: f32[2,4,256], index: 6, kind: output, shape index: {}]
  %s7 = sld [smem:[#allocation0]]
  $region45: #{tpu_custom_call.1} parent=0
    _
  %s9 = ssub.s32 1, %s7
  %s10 = scalar_select 0, %s9, %s7
  %12 = dma.hbm_to_smem %s0, 16, [#allocation3], [#allocation2]
  %s13 = sshll.u32 %s1, 4
  %s14 = int_to_ptr.vmem [resolvable:$true] %s13
  %16 = dma.vmem_to_smem %s14, 16, [#allocation4], [#allocation2]
  %s17 = sshll.u32 %s2, 4
  %s18 = int_to_ptr.vmem [resolvable:$true] %s17
  %20 = dma.vmem_to_smem %s18, 16, [#allocation5], [#allocation2]
  %22 = dma.hbm_to_smem %s3, 16, [#allocation6], [#allocation2]
  %23 = dma.done [#allocation2], 64
  %24 = sfence
  $region1: #{tpu_custom_call.1} parent=0
    #allocation7 [shape = 'u8[4096]{0}', space=vmem, size = 0x1000, scoped, tag = 'input window, operand 4, single buffered']
    #allocation8 [shape = 's32[2]{0}', space=sflag, size = 0x8, scoped, tag = 'scoped memory for tpu_custom_call.1']
    #allocation9 [shape = 's32[2]{0}', space=sflag, size = 0x8, scoped, tag = 'scoped memory for tpu_custom_call.1']
    #allocation10 [shape = 'u8[8192]{0}', space=vmem, size = 0x2000, scoped, tag = 'output window, operand 0']
    %25 = vsyncpa [#allocation8], 0
    %26 = vsyncpa [#allocation9], 0
    %s27 = scalar_lea.sflag [#allocation9], 1
    %28 = vsyncpa %s27, 0
    loop: start=0, step=1, limit=4
    $region2: #{tpu_custom_call.1} parent=1 // loop_pre_header
      _
    $region3: #{tpu_custom_call.1} parent=1 // loop_header
      %s30 = sphi 0, %s34
      %p31 = scmp.ge.s32.totalorder %s30, 4
      %s38 = sphi 0, %s38
      %s40 = sphi 0, %s38
      %s41 = sphi 0, %s40
      %s55 = sphi 0, %s41
      %s61 = sphi 0, %s63
      %s64 = sphi 0, %s61
      %s65 = sphi 0, %s64
      %s81 = sphi 0, %s65
      %s87 = sphi 0, %s89
      %s90 = sphi 0, %s87
      %s91 = sphi 0, %s90
      %s107 = sphi 0, %s91
    $region4: #{tpu_custom_call.1} parent=1 // loop_header_branch
      %33 = sbr.rel (%p31) target = $region8
    $region5: #{tpu_custom_call.1} parent=1 // loop_body
      %s35 = ssub.s32 %s30, 1
      %s36 = ssub.s32 %s30, 2
      %s37 = sadd.s32 %s30, 1
      %s39 = sadd.s32 %s38, 1
      %p42 = scmp.eq.s32.totalorder %s30, 1
      %p43 = scmp.ne.s32.totalorder %s38, %s40
      %p44 = scmp.eq.s32.totalorder %s30, 0
      %p45 = por %p43, %p44
      %p46 = scmp.ne.s32.totalorder %s38, %s40
      %p47 = scmp.eq.s32.totalorder %s35, 1
      %p48 = por %p46, %p47
      %p49 = scmp.ne.s32.totalorder %s40, %s41
      %p50 = scmp.eq.s32.totalorder %s35, 0
      %p51 = por %p49, %p50
      %p52 = scmp.ne.s32.totalorder %s40, %s41
      %p53 = scmp.eq.s32.totalorder %s36, 1
      %p54 = por %p52, %p53
      %p56 = scmp.ne.s32.totalorder %s41, %s55
      %p57 = scmp.eq.s32.totalorder %s36, 0
      %p58 = por %p56, %p57
      %s59 = ssub.s32 %s30, %s37
      %p60 = scmp.eq.s32.totalorder %s59, 0
      %s62 = sadd.s32 %s61, 1
      %s63 = scalar_select %p60, %s61, %s62
      %p66 = pneg %p60
      %p67 = scmp.eq.s32.totalorder %s30, 1
      %p68 = por %p66, %p67
      %p69 = scmp.ne.s32.totalorder %s61, %s64
      %p70 = scmp.eq.s32.totalorder %s30, 0
      %p71 = por %p69, %p70
      %p72 = scmp.ne.s32.totalorder %s61, %s64
      %p73 = scmp.eq.s32.totalorder %s35, 1
      %p74 = por %p72, %p73
      %p75 = scmp.ne.s32.totalorder %s64, %s65
      %p76 = scmp.eq.s32.totalorder %s35, 0
      %p77 = por %p75, %p76
      %p78 = scmp.ne.s32.totalorder %s64, %s65
      %p79 = scmp.eq.s32.totalorder %s36, 1
      %p80 = por %p78, %p79
      %p82 = scmp.ne.s32.totalorder %s65, %s81
      %p83 = scmp.eq.s32.totalorder %s36, 0
      %p84 = por %p82, %p83
      %s85 = ssub.s32 %s30, %s37
      %p86 = scmp.eq.s32.totalorder %s85, 0
      %s88 = sadd.s32 %s87, 1
      %s89 = scalar_select %p86, %s87, %s88
      %p92 = pneg %p86
      %p93 = scmp.eq.s32.totalorder %s30, 1
      %p94 = por %p92, %p93
      %p95 = scmp.ne.s32.totalorder %s87, %s90
      %p96 = scmp.eq.s32.totalorder %s30, 0
      %p97 = por %p95, %p96
      %p98 = scmp.ne.s32.totalorder %s87, %s90
      %p99 = scmp.eq.s32.totalorder %s35, 1
      %p100 = por %p98, %p99
      %p101 = scmp.ne.s32.totalorder %s90, %s91
      %p102 = scmp.eq.s32.totalorder %s35, 0
      %p103 = por %p101, %p102
      %p104 = scmp.ne.s32.totalorder %s90, %s91
      %p105 = scmp.eq.s32.totalorder %s36, 1
      %p106 = por %p104, %p105
      %p108 = scmp.ne.s32.totalorder %s91, %s107
      %p109 = scmp.eq.s32.totalorder %s36, 0
      %p110 = por %p108, %p109
      %p111 = scmp.le.s32.totalorder 1, %s30
      %p112 = scmp.lt.s32.totalorder %s30, 3
      %p113 = pnand %p111, %p112
      %p114 = pneg %p113
      // Predicated region
      $region9: #{tpu_custom_call.1} parent=5 // pred_check
        _
      $region10: #{tpu_custom_call.1} parent=5 // pred_check_branch
        %116 = sbr.rel (%p113) target = $region12
      $region11: #{tpu_custom_call.1} parent=5 // pred_region
        %s117 = ssub.s32 %s30, 1
        // Predicated region
        $region13: #{tpu_custom_call.1} parent=11 // pred_check
          %p118 = pneg %p51
        $region14: #{tpu_custom_call.1} parent=11 // pred_check_branch
          %120 = sbr.rel (%p118) target = $region16
        $region15: #{tpu_custom_call.1} parent=11 // pred_region
          %s122 = ssub.s32 128, 128
          %123 = vsyncadd [#allocation8], %s122
          %s125 = sshll.u32 [#allocation7], 4
          %s126 = int_to_ptr.vmem [resolvable:$true] %s125
          %128 = dma.hbm_to_vmem [thread:$0]  %s4, 128, %s126, [#allocation8]
        $region16: #{tpu_custom_call.1} parent=11 // pred_fallthru
          _
      $region12: #{tpu_custom_call.1} parent=5 // pred_fallthru
        _
      %p129 = scmp.lt.s32.totalorder %s30, 2
      // Predicated region
      $region17: #{tpu_custom_call.1} parent=5 // pred_check
        %p130 = pneg %p129
      $region18: #{tpu_custom_call.1} parent=5 // pred_check_branch
        %132 = sbr.rel (%p130) target = $region20
      $region19: #{tpu_custom_call.1} parent=5 // pred_region
        // Predicated region
        $region21: #{tpu_custom_call.1} parent=19 // pred_check
          %p133 = pneg %p71
        $region22: #{tpu_custom_call.1} parent=19 // pred_check_branch
          %135 = sbr.rel (%p133) target = $region24
        $region23: #{tpu_custom_call.1} parent=19 // pred_region
          %p136 = scmp.lt.s32.totalorder %s30, 1
          %s137 = scalar_select %p136, %s30, 1
          %s138 = smul.addr %s137, 2
          %s139 = smul.addr %s138, 4
          %s140 = scalar_lea.vmem %s5, %s139
        $region24: #{tpu_custom_call.1} parent=19 // pred_fallthru
          _
      $region20: #{tpu_custom_call.1} parent=5 // pred_fallthru
        _
      %p141 = scmp.le.s32.totalorder 1, %s30
      %p142 = scmp.lt.s32.totalorder %s30, 3
      %p143 = pnand %p141, %p142
      %p144 = pneg %p143
      // Predicated region
      $region25: #{tpu_custom_call.1} parent=5 // pred_check
        _
      $region26: #{tpu_custom_call.1} parent=5 // pred_check_branch
        %146 = sbr.rel (%p143) target = $region28
      $region27: #{tpu_custom_call.1} parent=5 // pred_region
        %s147 = ssub.s32 %s30, 1
        // Predicated region
        $region29: #{tpu_custom_call.1} parent=27 // pred_check
          %p148 = pneg %p51
        $region30: #{tpu_custom_call.1} parent=27 // pred_check_branch
          %150 = sbr.rel (%p148) target = $region32
        $region31: #{tpu_custom_call.1} parent=27 // pred_region
          %151 = dma.done [#allocation8], 128
        $region32: #{tpu_custom_call.1} parent=27 // pred_fallthru
          _
        %p152 = pneg %p51
        %p153 = pneg %p48
        %p154 = scmp.lt.s32.totalorder %s35, 1
        %s155 = scalar_select %p154, %s35, 1
        %s156 = smul.addr %s155, 2
        %s157 = smul.addr %s156, 4
        %s158 = scalar_lea.vmem %s5, %s157
        %p159 = pneg %p77
        %p160 = pneg %p74
        %p161 = pneg %p103
        %p162 = pneg %p100
        %s163 = sand.u32 %s90, 1
        %s164 = scalar_lea.sflag [#allocation9], %s163
        %s165 = sand.u32 %s90, 1
        %s166 = smul.addr %s165, 8
        %s167 = scalar_lea.vmem [#allocation10], %s166
        %p168 = scmp.lt.s32.totalorder %s35, 1
        %s169 = scalar_select %p168, %s35, 1
        %s170 = smul.addr %s169, 2
        %s171 = smul.addr %s170, 4
        %s172 = scalar_lea.vmem %s5, %s171
        %s173 = sld [smem:[#allocation5 + %s35]]
        %s174 = sld [smem:[#allocation6 + %s35]]
        %s175 = sld [smem:[#allocation3 + %s35]]
        %s176 = sld [smem:[#allocation4 + %s35]]
        %v177 = vld [vmem:[#allocation7] ss:$4 sm:$0x3]
        %s178 = scalar_lea.vmem [#allocation7], 1
        %v179 = vld [vmem:[%s178] ss:$4 sm:$0x3]
        %s180 = scalar_lea.vmem [#allocation7], 2
        %v181 = vld [vmem:[%s180] ss:$4 sm:$0x3]
        %v182 = vstv %s173
        %v183 = vmul.f32 %v182, %v177
        %v184 = vstv %s174
        %v185 = vmul.f32 %v184, %v179
        %v186 = vadd.f32 %v183, %v185
        %v187 = vadd.f32 %v186, 5.5
        %s188 = ssub.f32 0.0, %s174
        %v189 = vstv %s188
        %v190 = vmul.f32 %v189, %v177
        %v191 = vmul.f32 %v182, %v179
        %v192 = vadd.f32 %v190, %v191
        %v193 = vadd.f32 %v192, 5.5
        %v194 = vfloor.f32 %v187
        %v195 = vfloor.f32 %v193
        %v196 = vcvt.f32.s32.to.zero.pseudo %v194
        %v197 = vcvt.f32.s32.to.zero.pseudo %v195
        %v198 = vadd.s32 %v196, 1
        %v199 = vadd.s32 %v197, 1
        %v200 = vsub.f32 %v187, %v194
        %v201 = vsub.f32 1.0, %v200
        %v202 = vsub.f32 %v193, %v195
        %v203 = vsub.f32 1.0, %v202
        %v204 = vlaneseq
        %v205 = vshrl.u32 %v204, 7
        %v206 = vadd.s32 %v205, 8
        %v207 = vadd.s32 %v205, 16
        %v208 = vadd.s32 %v205, 24
        %v209 = vadd.s32 %v205, 32
        %v210 = vadd.s32 %v205, 40
        %v211 = vadd.s32 %v205, 48
        %v212 = vadd.s32 %v205, 56
        %v213 = vadd.s32 %v205, 64
        %v214 = vadd.s32 %v205, 72
        %v215 = vadd.s32 %v205, 80
        %v216 = vadd.s32 %v205, 88
        %v217 = vadd.s32 %v205, 96
        %v218 = vadd.s32 %v205, 104
        %v219 = vadd.s32 %v205, 112
        %v220 = vadd.s32 %v205, 120
        %v221 = vadd.s32 %v205, 128
        %v222 = vadd.s32 %v205, 136
        %v223 = vadd.s32 %v205, 144
        %v224 = vadd.s32 %v205, 152
        %v225 = vadd.s32 %v205, 160
        %v226 = vadd.s32 %v205, 168
        %v227 = vadd.s32 %v205, 176
        %v228 = vadd.s32 %v205, 184
        %v229 = vadd.s32 %v205, 192
        %v230 = vadd.s32 %v205, 200
        %v231 = vadd.s32 %v205, 208
        %v232 = vadd.s32 %v205, 216
        %v233 = vadd.s32 %v205, 224
        %v234 = vadd.s32 %v205, 232
        %v235 = vadd.s32 %v205, 240
        %v236 = vadd.s32 %v205, 248
        %v237 = vmul.f32 %v203, %v201
        %v238 = vmul.f32 %v203, %v200
        %v239 = vmul.f32 %v202, %v201
        %v240 = vmul.f32 %v202, %v200
        %vm241 = vcmp.ge.s32.totalorder %v196, 0
        %vm242 = vcmp.lt.s32.totalorder %v196, 12
        %vm243 = vmand %vm241, %vm242
        %vm244 = vcmp.ge.s32.totalorder %v197, 0
        %vm245 = vmand %vm243, %vm244
        %vm246 = vcmp.lt.s32.totalorder %v197, 12
        %vm247 = vmand %vm245, %vm246
        %v248 = vsel %vm247, %v237, 0.0
        %vm249 = vcmp.gt.s32.totalorder %v197, 0
        %v250 = vsel %vm249, %v197, 0
        %vm251 = vcmp.lt.s32.totalorder %v250, 11
        %v252 = vsel %vm251, %v250, 11
        %v253 = vstv %s175
        %v254 = vadd.s32 %v252, %v253
        %vm255 = vcmp.gt.s32.totalorder %v196, 0
        %v256 = vsel %vm255, %v196, 0
        %vm257 = vcmp.lt.s32.totalorder %v256, 11
        %v258 = vsel %vm257, %v256, 11
        %v259 = vstv %s176
        %v260 = vadd.s32 %v258, %v259
        %v261 = vmul.u32 %v254, 16
        %v262 = vadd.s32 %v261, %v260
        %v263 = vlaneseq
        %v264 = vshrl.u32 %v263, 7
        %v265 = vsub.s32 0, %v264
        %v266 = vrot.slane %v262, %v265
        %v267 = vlaneseq
        %v268 = vshrl.u32 %v267, 7
        %v269 = vsub.s32 1, %v268
        %v270 = vrot.slane %v262, %v269
        %vm271 = vcmp.eq.s32.totalorder %v205, %v266
        %vm272 = vcmp.eq.s32.totalorder %v205, %v270
        %vm273 = vcmp.eq.s32.totalorder %v206, %v266
        %vm274 = vcmp.eq.s32.totalorder %v206, %v270
        %vm275 = vcmp.eq.s32.totalorder %v207, %v266
        %vm276 = vcmp.eq.s32.totalorder %v207, %v270
        %vm277 = vcmp.eq.s32.totalorder %v208, %v266
        %vm278 = vcmp.eq.s32.totalorder %v208, %v270
        %vm279 = vcmp.eq.s32.totalorder %v209, %v266
        %vm280 = vcmp.eq.s32.totalorder %v209, %v270
        %vm281 = vcmp.eq.s32.totalorder %v210, %v266
        %vm282 = vcmp.eq.s32.totalorder %v210, %v270
        %vm283 = vcmp.eq.s32.totalorder %v211, %v266
        %vm284 = vcmp.eq.s32.totalorder %v211, %v270
        %vm285 = vcmp.eq.s32.totalorder %v212, %v266
        %vm286 = vcmp.eq.s32.totalorder %v212, %v270
        %vm287 = vcmp.eq.s32.totalorder %v213, %v266
        %vm288 = vcmp.eq.s32.totalorder %v213, %v270
        %vm289 = vcmp.eq.s32.totalorder %v214, %v266
        %vm290 = vcmp.eq.s32.totalorder %v214, %v270
        %vm291 = vcmp.eq.s32.totalorder %v215, %v266
        %vm292 = vcmp.eq.s32.totalorder %v215, %v270
        %vm293 = vcmp.eq.s32.totalorder %v216, %v266
        %vm294 = vcmp.eq.s32.totalorder %v216, %v270
        %vm295 = vcmp.eq.s32.totalorder %v217, %v266
        %vm296 = vcmp.eq.s32.totalorder %v217, %v270
        %vm297 = vcmp.eq.s32.totalorder %v218, %v266
        %vm298 = vcmp.eq.s32.totalorder %v218, %v270
        %vm299 = vcmp.eq.s32.totalorder %v219, %v266
        %vm300 = vcmp.eq.s32.totalorder %v219, %v270
        %vm301 = vcmp.eq.s32.totalorder %v220, %v266
        %vm302 = vcmp.eq.s32.totalorder %v220, %v270
        %vm303 = vcmp.eq.s32.totalorder %v221, %v266
        %vm304 = vcmp.eq.s32.totalorder %v221, %v270
        %vm305 = vcmp.eq.s32.totalorder %v222, %v266
        %vm306 = vcmp.eq.s32.totalorder %v222, %v270
        %vm307 = vcmp.eq.s32.totalorder %v223, %v266
        %vm308 = vcmp.eq.s32.totalorder %v223, %v270
        %vm309 = vcmp.eq.s32.totalorder %v224, %v266
        %vm310 = vcmp.eq.s32.totalorder %v224, %v270
        %vm311 = vcmp.eq.s32.totalorder %v225, %v266
        %vm312 = vcmp.eq.s32.totalorder %v225, %v270
        %vm313 = vcmp.eq.s32.totalorder %v226, %v266
        %vm314 = vcmp.eq.s32.totalorder %v226, %v270
        %vm315 = vcmp.eq.s32.totalorder %v227, %v266
        %vm316 = vcmp.eq.s32.totalorder %v227, %v270
        %vm317 = vcmp.eq.s32.totalorder %v228, %v266
        %vm318 = vcmp.eq.s32.totalorder %v228, %v270
        %vm319 = vcmp.eq.s32.totalorder %v229, %v266
        %vm320 = vcmp.eq.s32.totalorder %v229, %v270
        %vm321 = vcmp.eq.s32.totalorder %v230, %v266
        %vm322 = vcmp.eq.s32.totalorder %v230, %v270
        %vm323 = vcmp.eq.s32.totalorder %v231, %v266
        %vm324 = vcmp.eq.s32.totalorder %v231, %v270
        %vm325 = vcmp.eq.s32.totalorder %v232, %v266
        %vm326 = vcmp.eq.s32.totalorder %v232, %v270
        %vm327 = vcmp.eq.s32.totalorder %v233, %v266
        %vm328 = vcmp.eq.s32.totalorder %v233, %v270
        %vm329 = vcmp.eq.s32.totalorder %v234, %v266
        %vm330 = vcmp.eq.s32.totalorder %v234, %v270
        %vm331 = vcmp.eq.s32.totalorder %v235, %v266
        %vm332 = vcmp.eq.s32.totalorder %v235, %v270
        %vm333 = vcmp.eq.s32.totalorder %v236, %v266
        %vm334 = vcmp.eq.s32.totalorder %v236, %v270
        %v336 = vlaneseq
        %v337 = vshrl.u32 %v336, 7
        %v338 = vsub.s32 0, %v337
        %v339 = vrot.slane %v248, %v338
        %v340 = vlaneseq
        %v341 = vshrl.u32 %v340, 7
        %v342 = vsub.s32 1, %v341
        %v343 = vrot.slane %v248, %v342
        %v346 = vsel %vm271, %v339, 0.0
        %v347 = vsel %vm272, %v343, 0.0
        %v348 = vsel %vm273, %v339, 0.0
        %v349 = vsel %vm274, %v343, 0.0
        %v350 = vsel %vm275, %v339, 0.0
        %v351 = vsel %vm276, %v343, 0.0
        %v352 = vsel %vm277, %v339, 0.0
        %v353 = vsel %vm278, %v343, 0.0
        %v354 = vsel %vm279, %v339, 0.0
        %v355 = vsel %vm280, %v343, 0.0
        %v356 = vsel %vm281, %v339, 0.0
        %v357 = vsel %vm282, %v343, 0.0
        %v358 = vsel %vm283, %v339, 0.0
        %v359 = vsel %vm284, %v343, 0.0
        %v360 = vsel %vm285, %v339, 0.0
        %v361 = vsel %vm286, %v343, 0.0
        %v362 = vsel %vm287, %v339, 0.0
        %v363 = vsel %vm288, %v343, 0.0
        %v364 = vsel %vm289, %v339, 0.0
        %v365 = vsel %vm290, %v343, 0.0
        %v366 = vsel %vm291, %v339, 0.0
        %v367 = vsel %vm292, %v343, 0.0
        %v368 = vsel %vm293, %v339, 0.0
        %v369 = vsel %vm294, %v343, 0.0
        %v370 = vsel %vm295, %v339, 0.0
        %v371 = vsel %vm296, %v343, 0.0
        %v372 = vsel %vm297, %v339, 0.0
        %v373 = vsel %vm298, %v343, 0.0
        %v374 = vsel %vm299, %v339, 0.0
        %v375 = vsel %vm300, %v343, 0.0
        %v376 = vsel %vm301, %v339, 0.0
        %v377 = vsel %vm302, %v343, 0.0
        %v378 = vsel %vm303, %v339, 0.0
        %v379 = vsel %vm304, %v343, 0.0
        %v380 = vsel %vm305, %v339, 0.0
        %v381 = vsel %vm306, %v343, 0.0
        %v382 = vsel %vm307, %v339, 0.0
        %v383 = vsel %vm308, %v343, 0.0
        %v384 = vsel %vm309, %v339, 0.0
        %v385 = vsel %vm310, %v343, 0.0
        %v386 = vsel %vm311, %v339, 0.0
        %v387 = vsel %vm312, %v343, 0.0
        %v388 = vsel %vm313, %v339, 0.0
        %v389 = vsel %vm314, %v343, 0.0
        %v390 = vsel %vm315, %v339, 0.0
        %v391 = vsel %vm316, %v343, 0.0
        %v392 = vsel %vm317, %v339, 0.0
        %v393 = vsel %vm318, %v343, 0.0
        %v394 = vsel %vm319, %v339, 0.0
        %v395 = vsel %vm320, %v343, 0.0
        %v396 = vsel %vm321, %v339, 0.0
        %v397 = vsel %vm322, %v343, 0.0
        %v398 = vsel %vm323, %v339, 0.0
        %v399 = vsel %vm324, %v343, 0.0
        %v400 = vsel %vm325, %v339, 0.0
        %v401 = vsel %vm326, %v343, 0.0
        %v402 = vsel %vm327, %v339, 0.0
        %v403 = vsel %vm328, %v343, 0.0
        %v404 = vsel %vm329, %v339, 0.0
        %v405 = vsel %vm330, %v343, 0.0
        %v406 = vsel %vm331, %v339, 0.0
        %v407 = vsel %vm332, %v343, 0.0
        %v408 = vsel %vm333, %v339, 0.0
        %v409 = vsel %vm334, %v343, 0.0
        %vm410 = vcmp.ge.s32.totalorder %v198, 0
        %vm411 = vcmp.lt.s32.totalorder %v198, 12
        %vm412 = vmand %vm410, %vm411
        %vm413 = vmand %vm412, %vm244
        %vm414 = vmand %vm413, %vm246
        %v415 = vsel %vm414, %v238, 0.0
        %vm416 = vcmp.gt.s32.totalorder %v198, 0
        %v417 = vsel %vm416, %v198, 0
        %vm418 = vcmp.lt.s32.totalorder %v417, 11
        %v419 = vsel %vm418, %v417, 11
        %v420 = vadd.s32 %v419, %v259
        %v421 = vadd.s32 %v261, %v420
        %v422 = vlaneseq
        %v423 = vshrl.u32 %v422, 7
        %v424 = vsub.s32 0, %v423
        %v425 = vrot.slane %v421, %v424
        %v426 = vlaneseq
        %v427 = vshrl.u32 %v426, 7
        %v428 = vsub.s32 1, %v427
        %v429 = vrot.slane %v421, %v428
        %vm430 = vcmp.eq.s32.totalorder %v205, %v425
        %vm431 = vcmp.eq.s32.totalorder %v205, %v429
        %vm432 = vcmp.eq.s32.totalorder %v206, %v425
        %vm433 = vcmp.eq.s32.totalorder %v206, %v429
        %vm434 = vcmp.eq.s32.totalorder %v207, %v425
        %vm435 = vcmp.eq.s32.totalorder %v207, %v429
        %vm436 = vcmp.eq.s32.totalorder %v208, %v425
        %vm437 = vcmp.eq.s32.totalorder %v208, %v429
        %vm438 = vcmp.eq.s32.totalorder %v209, %v425
        %vm439 = vcmp.eq.s32.totalorder %v209, %v429
        %vm440 = vcmp.eq.s32.totalorder %v210, %v425
        %vm441 = vcmp.eq.s32.totalorder %v210, %v429
        %vm442 = vcmp.eq.s32.totalorder %v211, %v425
        %vm443 = vcmp.eq.s32.totalorder %v211, %v429
        %vm444 = vcmp.eq.s32.totalorder %v212, %v425
        %vm445 = vcmp.eq.s32.totalorder %v212, %v429
        %vm446 = vcmp.eq.s32.totalorder %v213, %v425
        %vm447 = vcmp.eq.s32.totalorder %v213, %v429
        %vm448 = vcmp.eq.s32.totalorder %v214, %v425
        %vm449 = vcmp.eq.s32.totalorder %v214, %v429
        %vm450 = vcmp.eq.s32.totalorder %v215, %v425
        %vm451 = vcmp.eq.s32.totalorder %v215, %v429
        %vm452 = vcmp.eq.s32.totalorder %v216, %v425
        %vm453 = vcmp.eq.s32.totalorder %v216, %v429
        %vm454 = vcmp.eq.s32.totalorder %v217, %v425
        %vm455 = vcmp.eq.s32.totalorder %v217, %v429
        %vm456 = vcmp.eq.s32.totalorder %v218, %v425
        %vm457 = vcmp.eq.s32.totalorder %v218, %v429
        %vm458 = vcmp.eq.s32.totalorder %v219, %v425
        %vm459 = vcmp.eq.s32.totalorder %v219, %v429
        %vm460 = vcmp.eq.s32.totalorder %v220, %v425
        %vm461 = vcmp.eq.s32.totalorder %v220, %v429
        %vm462 = vcmp.eq.s32.totalorder %v221, %v425
        %vm463 = vcmp.eq.s32.totalorder %v221, %v429
        %vm464 = vcmp.eq.s32.totalorder %v222, %v425
        %vm465 = vcmp.eq.s32.totalorder %v222, %v429
        %vm466 = vcmp.eq.s32.totalorder %v223, %v425
        %vm467 = vcmp.eq.s32.totalorder %v223, %v429
        %vm468 = vcmp.eq.s32.totalorder %v224, %v425
        %vm469 = vcmp.eq.s32.totalorder %v224, %v429
        %vm470 = vcmp.eq.s32.totalorder %v225, %v425
        %vm471 = vcmp.eq.s32.totalorder %v225, %v429
        %vm472 = vcmp.eq.s32.totalorder %v226, %v425
        %vm473 = vcmp.eq.s32.totalorder %v226, %v429
        %vm474 = vcmp.eq.s32.totalorder %v227, %v425
        %vm475 = vcmp.eq.s32.totalorder %v227, %v429
        %vm476 = vcmp.eq.s32.totalorder %v228, %v425
        %vm477 = vcmp.eq.s32.totalorder %v228, %v429
        %vm478 = vcmp.eq.s32.totalorder %v229, %v425
        %vm479 = vcmp.eq.s32.totalorder %v229, %v429
        %vm480 = vcmp.eq.s32.totalorder %v230, %v425
        %vm481 = vcmp.eq.s32.totalorder %v230, %v429
        %vm482 = vcmp.eq.s32.totalorder %v231, %v425
        %vm483 = vcmp.eq.s32.totalorder %v231, %v429
        %vm484 = vcmp.eq.s32.totalorder %v232, %v425
        %vm485 = vcmp.eq.s32.totalorder %v232, %v429
        %vm486 = vcmp.eq.s32.totalorder %v233, %v425
        %vm487 = vcmp.eq.s32.totalorder %v233, %v429
        %vm488 = vcmp.eq.s32.totalorder %v234, %v425
        %vm489 = vcmp.eq.s32.totalorder %v234, %v429
        %vm490 = vcmp.eq.s32.totalorder %v235, %v425
        %vm491 = vcmp.eq.s32.totalorder %v235, %v429
        %vm492 = vcmp.eq.s32.totalorder %v236, %v425
        %vm493 = vcmp.eq.s32.totalorder %v236, %v429
        %v495 = vlaneseq
        %v496 = vshrl.u32 %v495, 7
        %v497 = vsub.s32 0, %v496
        %v498 = vrot.slane %v415, %v497
        %v499 = vlaneseq
        %v500 = vshrl.u32 %v499, 7
        %v501 = vsub.s32 1, %v500
        %v502 = vrot.slane %v415, %v501
        %v505 = vsel %vm430, %v498, 0.0
        %v506 = vsel %vm431, %v502, 0.0
        %v507 = vsel %vm432, %v498, 0.0
        %v508 = vsel %vm433, %v502, 0.0
        %v509 = vsel %vm434, %v498, 0.0
        %v510 = vsel %vm435, %v502, 0.0
        %v511 = vsel %vm436, %v498, 0.0
        %v512 = vsel %vm437, %v502, 0.0
        %v513 = vsel %vm438, %v498, 0.0
        %v514 = vsel %vm439, %v502, 0.0
        %v515 = vsel %vm440, %v498, 0.0
        %v516 = vsel %vm441, %v502, 0.0
        %v517 = vsel %vm442, %v498, 0.0
        %v518 = vsel %vm443, %v502, 0.0
        %v519 = vsel %vm444, %v498, 0.0
        %v520 = vsel %vm445, %v502, 0.0
        %v521 = vsel %vm446, %v498, 0.0
        %v522 = vsel %vm447, %v502, 0.0
        %v523 = vsel %vm448, %v498, 0.0
        %v524 = vsel %vm449, %v502, 0.0
        %v525 = vsel %vm450, %v498, 0.0
        %v526 = vsel %vm451, %v502, 0.0
        %v527 = vsel %vm452, %v498, 0.0
        %v528 = vsel %vm453, %v502, 0.0
        %v529 = vsel %vm454, %v498, 0.0
        %v530 = vsel %vm455, %v502, 0.0
        %v531 = vsel %vm456, %v498, 0.0
        %v532 = vsel %vm457, %v502, 0.0
        %v533 = vsel %vm458, %v498, 0.0
        %v534 = vsel %vm459, %v502, 0.0
        %v535 = vsel %vm460, %v498, 0.0
        %v536 = vsel %vm461, %v502, 0.0
        %v537 = vsel %vm462, %v498, 0.0
        %v538 = vsel %vm463, %v502, 0.0
        %v539 = vsel %vm464, %v498, 0.0
        %v540 = vsel %vm465, %v502, 0.0
        %v541 = vsel %vm466, %v498, 0.0
        %v542 = vsel %vm467, %v502, 0.0
        %v543 = vsel %vm468, %v498, 0.0
        %v544 = vsel %vm469, %v502, 0.0
        %v545 = vsel %vm470, %v498, 0.0
        %v546 = vsel %vm471, %v502, 0.0
        %v547 = vsel %vm472, %v498, 0.0
        %v548 = vsel %vm473, %v502, 0.0
        %v549 = vsel %vm474, %v498, 0.0
        %v550 = vsel %vm475, %v502, 0.0
        %v551 = vsel %vm476, %v498, 0.0
        %v552 = vsel %vm477, %v502, 0.0
        %v553 = vsel %vm478, %v498, 0.0
        %v554 = vsel %vm479, %v502, 0.0
        %v555 = vsel %vm480, %v498, 0.0
        %v556 = vsel %vm481, %v502, 0.0
        %v557 = vsel %vm482, %v498, 0.0
        %v558 = vsel %vm483, %v502, 0.0
        %v559 = vsel %vm484, %v498, 0.0
        %v560 = vsel %vm485, %v502, 0.0
        %v561 = vsel %vm486, %v498, 0.0
        %v562 = vsel %vm487, %v502, 0.0
        %v563 = vsel %vm488, %v498, 0.0
        %v564 = vsel %vm489, %v502, 0.0
        %v565 = vsel %vm490, %v498, 0.0
        %v566 = vsel %vm491, %v502, 0.0
        %v567 = vsel %vm492, %v498, 0.0
        %v568 = vsel %vm493, %v502, 0.0
        %v569 = vadd.f32 %v346, %v505
        %v570 = vadd.f32 %v347, %v506
        %v571 = vadd.f32 %v348, %v507
        %v572 = vadd.f32 %v349, %v508
        %v573 = vadd.f32 %v350, %v509
        %v574 = vadd.f32 %v351, %v510
        %v575 = vadd.f32 %v352, %v511
        %v576 = vadd.f32 %v353, %v512
        %v577 = vadd.f32 %v354, %v513
        %v578 = vadd.f32 %v355, %v514
        %v579 = vadd.f32 %v356, %v515
        %v580 = vadd.f32 %v357, %v516
        %v581 = vadd.f32 %v358, %v517
        %v582 = vadd.f32 %v359, %v518
        %v583 = vadd.f32 %v360, %v519
        %v584 = vadd.f32 %v361, %v520
        %v585 = vadd.f32 %v362, %v521
        %v586 = vadd.f32 %v363, %v522
        %v587 = vadd.f32 %v364, %v523
        %v588 = vadd.f32 %v365, %v524
        %v589 = vadd.f32 %v366, %v525
        %v590 = vadd.f32 %v367, %v526
        %v591 = vadd.f32 %v368, %v527
        %v592 = vadd.f32 %v369, %v528
        %v593 = vadd.f32 %v370, %v529
        %v594 = vadd.f32 %v371, %v530
        %v595 = vadd.f32 %v372, %v531
        %v596 = vadd.f32 %v373, %v532
        %v597 = vadd.f32 %v374, %v533
        %v598 = vadd.f32 %v375, %v534
        %v599 = vadd.f32 %v376, %v535
        %v600 = vadd.f32 %v377, %v536
        %v601 = vadd.f32 %v378, %v537
        %v602 = vadd.f32 %v379, %v538
        %v603 = vadd.f32 %v380, %v539
        %v604 = vadd.f32 %v381, %v540
        %v605 = vadd.f32 %v382, %v541
        %v606 = vadd.f32 %v383, %v542
        %v607 = vadd.f32 %v384, %v543
        %v608 = vadd.f32 %v385, %v544
        %v609 = vadd.f32 %v386, %v545
        %v610 = vadd.f32 %v387, %v546
        %v611 = vadd.f32 %v388, %v547
        %v612 = vadd.f32 %v389, %v548
        %v613 = vadd.f32 %v390, %v549
        %v614 = vadd.f32 %v391, %v550
        %v615 = vadd.f32 %v392, %v551
        %v616 = vadd.f32 %v393, %v552
        %v617 = vadd.f32 %v394, %v553
        %v618 = vadd.f32 %v395, %v554
        %v619 = vadd.f32 %v396, %v555
        %v620 = vadd.f32 %v397, %v556
        %v621 = vadd.f32 %v398, %v557
        %v622 = vadd.f32 %v399, %v558
        %v623 = vadd.f32 %v400, %v559
        %v624 = vadd.f32 %v401, %v560
        %v625 = vadd.f32 %v402, %v561
        %v626 = vadd.f32 %v403, %v562
        %v627 = vadd.f32 %v404, %v563
        %v628 = vadd.f32 %v405, %v564
        %v629 = vadd.f32 %v406, %v565
        %v630 = vadd.f32 %v407, %v566
        %v631 = vadd.f32 %v408, %v567
        %v632 = vadd.f32 %v409, %v568
        %v633 = vadd.f32 %v248, %v415
        %vm634 = vcmp.ge.s32.totalorder %v199, 0
        %vm635 = vmand %vm243, %vm634
        %vm636 = vcmp.lt.s32.totalorder %v199, 12
        %vm637 = vmand %vm635, %vm636
        %v638 = vsel %vm637, %v239, 0.0
        %vm639 = vcmp.gt.s32.totalorder %v199, 0
        %v640 = vsel %vm639, %v199, 0
        %vm641 = vcmp.lt.s32.totalorder %v640, 11
        %v642 = vsel %vm641, %v640, 11
        %v643 = vadd.s32 %v642, %v253
        %v644 = vmul.u32 %v643, 16
        %v645 = vadd.s32 %v644, %v260
        %v646 = vlaneseq
        %v647 = vshrl.u32 %v646, 7
        %v648 = vsub.s32 0, %v647
        %v649 = vrot.slane %v645, %v648
        %v650 = vlaneseq
        %v651 = vshrl.u32 %v650, 7
        %v652 = vsub.s32 1, %v651
        %v653 = vrot.slane %v645, %v652
        %vm654 = vcmp.eq.s32.totalorder %v205, %v649
        %vm655 = vcmp.eq.s32.totalorder %v205, %v653
        %vm656 = vcmp.eq.s32.totalorder %v206, %v649
        %vm657 = vcmp.eq.s32.totalorder %v206, %v653
        %vm658 = vcmp.eq.s32.totalorder %v207, %v649
        %vm659 = vcmp.eq.s32.totalorder %v207, %v653
        %vm660 = vcmp.eq.s32.totalorder %v208, %v649
        %vm661 = vcmp.eq.s32.totalorder %v208, %v653
        %vm662 = vcmp.eq.s32.totalorder %v209, %v649
        %vm663 = vcmp.eq.s32.totalorder %v209, %v653
        %vm664 = vcmp.eq.s32.totalorder %v210, %v649
        %vm665 = vcmp.eq.s32.totalorder %v210, %v653
        %vm666 = vcmp.eq.s32.totalorder %v211, %v649
        %vm667 = vcmp.eq.s32.totalorder %v211, %v653
        %vm668 = vcmp.eq.s32.totalorder %v212, %v649
        %vm669 = vcmp.eq.s32.totalorder %v212, %v653
        %vm670 = vcmp.eq.s32.totalorder %v213, %v649
        %vm671 = vcmp.eq.s32.totalorder %v213, %v653
        %vm672 = vcmp.eq.s32.totalorder %v214, %v649
        %vm673 = vcmp.eq.s32.totalorder %v214, %v653
        %vm674 = vcmp.eq.s32.totalorder %v215, %v649
        %vm675 = vcmp.eq.s32.totalorder %v215, %v653
        %vm676 = vcmp.eq.s32.totalorder %v216, %v649
        %vm677 = vcmp.eq.s32.totalorder %v216, %v653
        %vm678 = vcmp.eq.s32.totalorder %v217, %v649
        %vm679 = vcmp.eq.s32.totalorder %v217, %v653
        %vm680 = vcmp.eq.s32.totalorder %v218, %v649
        %vm681 = vcmp.eq.s32.totalorder %v218, %v653
        %vm682 = vcmp.eq.s32.totalorder %v219, %v649
        %vm683 = vcmp.eq.s32.totalorder %v219, %v653
        %vm684 = vcmp.eq.s32.totalorder %v220, %v649
        %vm685 = vcmp.eq.s32.totalorder %v220, %v653
        %vm686 = vcmp.eq.s32.totalorder %v221, %v649
        %vm687 = vcmp.eq.s32.totalorder %v221, %v653
        %vm688 = vcmp.eq.s32.totalorder %v222, %v649
        %vm689 = vcmp.eq.s32.totalorder %v222, %v653
        %vm690 = vcmp.eq.s32.totalorder %v223, %v649
        %vm691 = vcmp.eq.s32.totalorder %v223, %v653
        %vm692 = vcmp.eq.s32.totalorder %v224, %v649
        %vm693 = vcmp.eq.s32.totalorder %v224, %v653
        %vm694 = vcmp.eq.s32.totalorder %v225, %v649
        %vm695 = vcmp.eq.s32.totalorder %v225, %v653
        %vm696 = vcmp.eq.s32.totalorder %v226, %v649
        %vm697 = vcmp.eq.s32.totalorder %v226, %v653
        %vm698 = vcmp.eq.s32.totalorder %v227, %v649
        %vm699 = vcmp.eq.s32.totalorder %v227, %v653
        %vm700 = vcmp.eq.s32.totalorder %v228, %v649
        %vm701 = vcmp.eq.s32.totalorder %v228, %v653
        %vm702 = vcmp.eq.s32.totalorder %v229, %v649
        %vm703 = vcmp.eq.s32.totalorder %v229, %v653
        %vm704 = vcmp.eq.s32.totalorder %v230, %v649
        %vm705 = vcmp.eq.s32.totalorder %v230, %v653
        %vm706 = vcmp.eq.s32.totalorder %v231, %v649
        %vm707 = vcmp.eq.s32.totalorder %v231, %v653
        %vm708 = vcmp.eq.s32.totalorder %v232, %v649
        %vm709 = vcmp.eq.s32.totalorder %v232, %v653
        %vm710 = vcmp.eq.s32.totalorder %v233, %v649
        %vm711 = vcmp.eq.s32.totalorder %v233, %v653
        %vm712 = vcmp.eq.s32.totalorder %v234, %v649
        %vm713 = vcmp.eq.s32.totalorder %v234, %v653
        %vm714 = vcmp.eq.s32.totalorder %v235, %v649
        %vm715 = vcmp.eq.s32.totalorder %v235, %v653
        %vm716 = vcmp.eq.s32.totalorder %v236, %v649
        %vm717 = vcmp.eq.s32.totalorder %v236, %v653
        %v719 = vlaneseq
        %v720 = vshrl.u32 %v719, 7
        %v721 = vsub.s32 0, %v720
        %v722 = vrot.slane %v638, %v721
        %v723 = vlaneseq
        %v724 = vshrl.u32 %v723, 7
        %v725 = vsub.s32 1, %v724
        %v726 = vrot.slane %v638, %v725
        %v729 = vsel %vm654, %v722, 0.0
        %v730 = vsel %vm655, %v726, 0.0
        %v731 = vsel %vm656, %v722, 0.0
        %v732 = vsel %vm657, %v726, 0.0
        %v733 = vsel %vm658, %v722, 0.0
        %v734 = vsel %vm659, %v726, 0.0
        %v735 = vsel %vm660, %v722, 0.0
        %v736 = vsel %vm661, %v726, 0.0
        %v737 = vsel %vm662, %v722, 0.0
        %v738 = vsel %vm663, %v726, 0.0
        %v739 = vsel %vm664, %v722, 0.0
        %v740 = vsel %vm665, %v726, 0.0
        %v741 = vsel %vm666, %v722, 0.0
        %v742 = vsel %vm667, %v726, 0.0
        %v743 = vsel %vm668, %v722, 0.0
        %v744 = vsel %vm669, %v726, 0.0
        %v745 = vsel %vm670, %v722, 0.0
        %v746 = vsel %vm671, %v726, 0.0
        %v747 = vsel %vm672, %v722, 0.0
        %v748 = vsel %vm673, %v726, 0.0
        %v749 = vsel %vm674, %v722, 0.0
        %v750 = vsel %vm675, %v726, 0.0
        %v751 = vsel %vm676, %v722, 0.0
        %v752 = vsel %vm677, %v726, 0.0
        %v753 = vsel %vm678, %v722, 0.0
        %v754 = vsel %vm679, %v726, 0.0
        %v755 = vsel %vm680, %v722, 0.0
        %v756 = vsel %vm681, %v726, 0.0
        %v757 = vsel %vm682, %v722, 0.0
        %v758 = vsel %vm683, %v726, 0.0
        %v759 = vsel %vm684, %v722, 0.0
        %v760 = vsel %vm685, %v726, 0.0
        %v761 = vsel %vm686, %v722, 0.0
        %v762 = vsel %vm687, %v726, 0.0
        %v763 = vsel %vm688, %v722, 0.0
        %v764 = vsel %vm689, %v726, 0.0
        %v765 = vsel %vm690, %v722, 0.0
        %v766 = vsel %vm691, %v726, 0.0
        %v767 = vsel %vm692, %v722, 0.0
        %v768 = vsel %vm693, %v726, 0.0
        %v769 = vsel %vm694, %v722, 0.0
        %v770 = vsel %vm695, %v726, 0.0
        %v771 = vsel %vm696, %v722, 0.0
        %v772 = vsel %vm697, %v726, 0.0
        %v773 = vsel %vm698, %v722, 0.0
        %v774 = vsel %vm699, %v726, 0.0
        %v775 = vsel %vm700, %v722, 0.0
        %v776 = vsel %vm701, %v726, 0.0
        %v777 = vsel %vm702, %v722, 0.0
        %v778 = vsel %vm703, %v726, 0.0
        %v779 = vsel %vm704, %v722, 0.0
        %v780 = vsel %vm705, %v726, 0.0
        %v781 = vsel %vm706, %v722, 0.0
        %v782 = vsel %vm707, %v726, 0.0
        %v783 = vsel %vm708, %v722, 0.0
        %v784 = vsel %vm709, %v726, 0.0
        %v785 = vsel %vm710, %v722, 0.0
        %v786 = vsel %vm711, %v726, 0.0
        %v787 = vsel %vm712, %v722, 0.0
        %v788 = vsel %vm713, %v726, 0.0
        %v789 = vsel %vm714, %v722, 0.0
        %v790 = vsel %vm715, %v726, 0.0
        %v791 = vsel %vm716, %v722, 0.0
        %v792 = vsel %vm717, %v726, 0.0
        %v793 = vadd.f32 %v569, %v729
        %v794 = vadd.f32 %v570, %v730
        %v795 = vadd.f32 %v571, %v731
        %v796 = vadd.f32 %v572, %v732
        %v797 = vadd.f32 %v573, %v733
        %v798 = vadd.f32 %v574, %v734
        %v799 = vadd.f32 %v575, %v735
        %v800 = vadd.f32 %v576, %v736
        %v801 = vadd.f32 %v577, %v737
        %v802 = vadd.f32 %v578, %v738
        %v803 = vadd.f32 %v579, %v739
        %v804 = vadd.f32 %v580, %v740
        %v805 = vadd.f32 %v581, %v741
        %v806 = vadd.f32 %v582, %v742
        %v807 = vadd.f32 %v583, %v743
        %v808 = vadd.f32 %v584, %v744
        %v809 = vadd.f32 %v585, %v745
        %v810 = vadd.f32 %v586, %v746
        %v811 = vadd.f32 %v587, %v747
        %v812 = vadd.f32 %v588, %v748
        %v813 = vadd.f32 %v589, %v749
        %v814 = vadd.f32 %v590, %v750
        %v815 = vadd.f32 %v591, %v751
        %v816 = vadd.f32 %v592, %v752
        %v817 = vadd.f32 %v593, %v753
        %v818 = vadd.f32 %v594, %v754
        %v819 = vadd.f32 %v595, %v755
        %v820 = vadd.f32 %v596, %v756
        %v821 = vadd.f32 %v597, %v757
        %v822 = vadd.f32 %v598, %v758
        %v823 = vadd.f32 %v599, %v759
        %v824 = vadd.f32 %v600, %v760
        %v825 = vadd.f32 %v601, %v761
        %v826 = vadd.f32 %v602, %v762
        %v827 = vadd.f32 %v603, %v763
        %v828 = vadd.f32 %v604, %v764
        %v829 = vadd.f32 %v605, %v765
        %v830 = vadd.f32 %v606, %v766
        %v831 = vadd.f32 %v607, %v767
        %v832 = vadd.f32 %v608, %v768
        %v833 = vadd.f32 %v609, %v769
        %v834 = vadd.f32 %v610, %v770
        %v835 = vadd.f32 %v611, %v771
        %v836 = vadd.f32 %v612, %v772
        %v837 = vadd.f32 %v613, %v773
        %v838 = vadd.f32 %v614, %v774
        %v839 = vadd.f32 %v615, %v775
        %v840 = vadd.f32 %v616, %v776
        %v841 = vadd.f32 %v617, %v777
        %v842 = vadd.f32 %v618, %v778
        %v843 = vadd.f32 %v619, %v779
        %v844 = vadd.f32 %v620, %v780
        %v845 = vadd.f32 %v621, %v781
        %v846 = vadd.f32 %v622, %v782
        %v847 = vadd.f32 %v623, %v783
        %v848 = vadd.f32 %v624, %v784
        %v849 = vadd.f32 %v625, %v785
        %v850 = vadd.f32 %v626, %v786
        %v851 = vadd.f32 %v627, %v787
        %v852 = vadd.f32 %v628, %v788
        %v853 = vadd.f32 %v629, %v789
        %v854 = vadd.f32 %v630, %v790
        %v855 = vadd.f32 %v631, %v791
        %v856 = vadd.f32 %v632, %v792
        %v857 = vadd.f32 %v633, %v638
        %vm858 = vmand %vm412, %vm634
        %vm859 = vmand %vm858, %vm636
        %v860 = vsel %vm859, %v240, 0.0
        %v861 = vadd.s32 %v644, %v420
        %v862 = vlaneseq
        %v863 = vshrl.u32 %v862, 7
        %v864 = vsub.s32 0, %v863
        %v865 = vrot.slane %v861, %v864
        %v866 = vlaneseq
        %v867 = vshrl.u32 %v866, 7
        %v868 = vsub.s32 1, %v867
        %v869 = vrot.slane %v861, %v868
        %vm870 = vcmp.eq.s32.totalorder %v205, %v865
        %vm871 = vcmp.eq.s32.totalorder %v205, %v869
        %vm872 = vcmp.eq.s32.totalorder %v206, %v865
        %vm873 = vcmp.eq.s32.totalorder %v206, %v869
        %vm874 = vcmp.eq.s32.totalorder %v207, %v865
        %vm875 = vcmp.eq.s32.totalorder %v207, %v869
        %vm876 = vcmp.eq.s32.totalorder %v208, %v865
        %vm877 = vcmp.eq.s32.totalorder %v208, %v869
        %vm878 = vcmp.eq.s32.totalorder %v209, %v865
        %vm879 = vcmp.eq.s32.totalorder %v209, %v869
        %vm880 = vcmp.eq.s32.totalorder %v210, %v865
        %vm881 = vcmp.eq.s32.totalorder %v210, %v869
        %vm882 = vcmp.eq.s32.totalorder %v211, %v865
        %vm883 = vcmp.eq.s32.totalorder %v211, %v869
        %vm884 = vcmp.eq.s32.totalorder %v212, %v865
        %vm885 = vcmp.eq.s32.totalorder %v212, %v869
        %vm886 = vcmp.eq.s32.totalorder %v213, %v865
        %vm887 = vcmp.eq.s32.totalorder %v213, %v869
        %vm888 = vcmp.eq.s32.totalorder %v214, %v865
        %vm889 = vcmp.eq.s32.totalorder %v214, %v869
        %vm890 = vcmp.eq.s32.totalorder %v215, %v865
        %vm891 = vcmp.eq.s32.totalorder %v215, %v869
        %vm892 = vcmp.eq.s32.totalorder %v216, %v865
        %vm893 = vcmp.eq.s32.totalorder %v216, %v869
        %vm894 = vcmp.eq.s32.totalorder %v217, %v865
        %vm895 = vcmp.eq.s32.totalorder %v217, %v869
        %vm896 = vcmp.eq.s32.totalorder %v218, %v865
        %vm897 = vcmp.eq.s32.totalorder %v218, %v869
        %vm898 = vcmp.eq.s32.totalorder %v219, %v865
        %vm899 = vcmp.eq.s32.totalorder %v219, %v869
        %vm900 = vcmp.eq.s32.totalorder %v220, %v865
        %vm901 = vcmp.eq.s32.totalorder %v220, %v869
        %vm902 = vcmp.eq.s32.totalorder %v221, %v865
        %vm903 = vcmp.eq.s32.totalorder %v221, %v869
        %vm904 = vcmp.eq.s32.totalorder %v222, %v865
        %vm905 = vcmp.eq.s32.totalorder %v222, %v869
        %vm906 = vcmp.eq.s32.totalorder %v223, %v865
        %vm907 = vcmp.eq.s32.totalorder %v223, %v869
        %vm908 = vcmp.eq.s32.totalorder %v224, %v865
        %vm909 = vcmp.eq.s32.totalorder %v224, %v869
        %vm910 = vcmp.eq.s32.totalorder %v225, %v865
        %vm911 = vcmp.eq.s32.totalorder %v225, %v869
        %vm912 = vcmp.eq.s32.totalorder %v226, %v865
        %vm913 = vcmp.eq.s32.totalorder %v226, %v869
        %vm914 = vcmp.eq.s32.totalorder %v227, %v865
        %vm915 = vcmp.eq.s32.totalorder %v227, %v869
        %vm916 = vcmp.eq.s32.totalorder %v228, %v865
        %vm917 = vcmp.eq.s32.totalorder %v228, %v869
        %vm918 = vcmp.eq.s32.totalorder %v229, %v865
        %vm919 = vcmp.eq.s32.totalorder %v229, %v869
        %vm920 = vcmp.eq.s32.totalorder %v230, %v865
        %vm921 = vcmp.eq.s32.totalorder %v230, %v869
        %vm922 = vcmp.eq.s32.totalorder %v231, %v865
        %vm923 = vcmp.eq.s32.totalorder %v231, %v869
        %vm924 = vcmp.eq.s32.totalorder %v232, %v865
        %vm925 = vcmp.eq.s32.totalorder %v232, %v869
        %vm926 = vcmp.eq.s32.totalorder %v233, %v865
        %vm927 = vcmp.eq.s32.totalorder %v233, %v869
        %vm928 = vcmp.eq.s32.totalorder %v234, %v865
        %vm929 = vcmp.eq.s32.totalorder %v234, %v869
        %vm930 = vcmp.eq.s32.totalorder %v235, %v865
        %vm931 = vcmp.eq.s32.totalorder %v235, %v869
        %vm932 = vcmp.eq.s32.totalorder %v236, %v865
        %vm933 = vcmp.eq.s32.totalorder %v236, %v869
        %v935 = vlaneseq
        %v936 = vshrl.u32 %v935, 7
        %v937 = vsub.s32 0, %v936
        %v938 = vrot.slane %v860, %v937
        %v939 = vlaneseq
        %v940 = vshrl.u32 %v939, 7
        %v941 = vsub.s32 1, %v940
        %v942 = vrot.slane %v860, %v941
        %v945 = vsel %vm870, %v938, 0.0
        %v946 = vsel %vm871, %v942, 0.0
        %v947 = vsel %vm872, %v938, 0.0
        %v948 = vsel %vm873, %v942, 0.0
        %v949 = vsel %vm874, %v938, 0.0
        %v950 = vsel %vm875, %v942, 0.0
        %v951 = vsel %vm876, %v938, 0.0
        %v952 = vsel %vm877, %v942, 0.0
        %v953 = vsel %vm878, %v938, 0.0
        %v954 = vsel %vm879, %v942, 0.0
        %v955 = vsel %vm880, %v938, 0.0
        %v956 = vsel %vm881, %v942, 0.0
        %v957 = vsel %vm882, %v938, 0.0
        %v958 = vsel %vm883, %v942, 0.0
        %v959 = vsel %vm884, %v938, 0.0
        %v960 = vsel %vm885, %v942, 0.0
        %v961 = vsel %vm886, %v938, 0.0
        %v962 = vsel %vm887, %v942, 0.0
        %v963 = vsel %vm888, %v938, 0.0
        %v964 = vsel %vm889, %v942, 0.0
        %v965 = vsel %vm890, %v938, 0.0
        %v966 = vsel %vm891, %v942, 0.0
        %v967 = vsel %vm892, %v938, 0.0
        %v968 = vsel %vm893, %v942, 0.0
        %v969 = vsel %vm894, %v938, 0.0
        %v970 = vsel %vm895, %v942, 0.0
        %v971 = vsel %vm896, %v938, 0.0
        %v972 = vsel %vm897, %v942, 0.0
        %v973 = vsel %vm898, %v938, 0.0
        %v974 = vsel %vm899, %v942, 0.0
        %v975 = vsel %vm900, %v938, 0.0
        %v976 = vsel %vm901, %v942, 0.0
        %v977 = vsel %vm902, %v938, 0.0
        %v978 = vsel %vm903, %v942, 0.0
        %v979 = vsel %vm904, %v938, 0.0
        %v980 = vsel %vm905, %v942, 0.0
        %v981 = vsel %vm906, %v938, 0.0
        %v982 = vsel %vm907, %v942, 0.0
        %v983 = vsel %vm908, %v938, 0.0
        %v984 = vsel %vm909, %v942, 0.0
        %v985 = vsel %vm910, %v938, 0.0
        %v986 = vsel %vm911, %v942, 0.0
        %v987 = vsel %vm912, %v938, 0.0
        %v988 = vsel %vm913, %v942, 0.0
        %v989 = vsel %vm914, %v938, 0.0
        %v990 = vsel %vm915, %v942, 0.0
        %v991 = vsel %vm916, %v938, 0.0
        %v992 = vsel %vm917, %v942, 0.0
        %v993 = vsel %vm918, %v938, 0.0
        %v994 = vsel %vm919, %v942, 0.0
        %v995 = vsel %vm920, %v938, 0.0
        %v996 = vsel %vm921, %v942, 0.0
        %v997 = vsel %vm922, %v938, 0.0
        %v998 = vsel %vm923, %v942, 0.0
        %v999 = vsel %vm924, %v938, 0.0
        %v1000 = vsel %vm925, %v942, 0.0
        %v1001 = vsel %vm926, %v938, 0.0
        %v1002 = vsel %vm927, %v942, 0.0
        %v1003 = vsel %vm928, %v938, 0.0
        %v1004 = vsel %vm929, %v942, 0.0
        %v1005 = vsel %vm930, %v938, 0.0
        %v1006 = vsel %vm931, %v942, 0.0
        %v1007 = vsel %vm932, %v938, 0.0
        %v1008 = vsel %vm933, %v942, 0.0
        %v1009 = vadd.f32 %v793, %v945
        %v1010 = vadd.f32 %v794, %v946
        %v1011 = vadd.f32 %v795, %v947
        %v1012 = vadd.f32 %v796, %v948
        %v1013 = vadd.f32 %v797, %v949
        %v1014 = vadd.f32 %v798, %v950
        %v1015 = vadd.f32 %v799, %v951
        %v1016 = vadd.f32 %v800, %v952
        %v1017 = vadd.f32 %v801, %v953
        %v1018 = vadd.f32 %v802, %v954
        %v1019 = vadd.f32 %v803, %v955
        %v1020 = vadd.f32 %v804, %v956
        %v1021 = vadd.f32 %v805, %v957
        %v1022 = vadd.f32 %v806, %v958
        %v1023 = vadd.f32 %v807, %v959
        %v1024 = vadd.f32 %v808, %v960
        %v1025 = vadd.f32 %v809, %v961
        %v1026 = vadd.f32 %v810, %v962
        %v1027 = vadd.f32 %v811, %v963
        %v1028 = vadd.f32 %v812, %v964
        %v1029 = vadd.f32 %v813, %v965
        %v1030 = vadd.f32 %v814, %v966
        %v1031 = vadd.f32 %v815, %v967
        %v1032 = vadd.f32 %v816, %v968
        %v1033 = vadd.f32 %v817, %v969
        %v1034 = vadd.f32 %v818, %v970
        %v1035 = vadd.f32 %v819, %v971
        %v1036 = vadd.f32 %v820, %v972
        %v1037 = vadd.f32 %v821, %v973
        %v1038 = vadd.f32 %v822, %v974
        %v1039 = vadd.f32 %v823, %v975
        %v1040 = vadd.f32 %v824, %v976
        %v1041 = vadd.f32 %v825, %v977
        %v1042 = vadd.f32 %v826, %v978
        %v1043 = vadd.f32 %v827, %v979
        %v1044 = vadd.f32 %v828, %v980
        %v1045 = vadd.f32 %v829, %v981
        %v1046 = vadd.f32 %v830, %v982
        %v1047 = vadd.f32 %v831, %v983
        %v1048 = vadd.f32 %v832, %v984
        %v1049 = vadd.f32 %v833, %v985
        %v1050 = vadd.f32 %v834, %v986
        %v1051 = vadd.f32 %v835, %v987
        %v1052 = vadd.f32 %v836, %v988
        %v1053 = vadd.f32 %v837, %v989
        %v1054 = vadd.f32 %v838, %v990
        %v1055 = vadd.f32 %v839, %v991
        %v1056 = vadd.f32 %v840, %v992
        %v1057 = vadd.f32 %v841, %v993
        %v1058 = vadd.f32 %v842, %v994
        %v1059 = vadd.f32 %v843, %v995
        %v1060 = vadd.f32 %v844, %v996
        %v1061 = vadd.f32 %v845, %v997
        %v1062 = vadd.f32 %v846, %v998
        %v1063 = vadd.f32 %v847, %v999
        %v1064 = vadd.f32 %v848, %v1000
        %v1065 = vadd.f32 %v849, %v1001
        %v1066 = vadd.f32 %v850, %v1002
        %v1067 = vadd.f32 %v851, %v1003
        %v1068 = vadd.f32 %v852, %v1004
        %v1069 = vadd.f32 %v853, %v1005
        %v1070 = vadd.f32 %v854, %v1006
        %v1071 = vadd.f32 %v855, %v1007
        %v1072 = vadd.f32 %v856, %v1008
        %v1073 = vadd.f32 %v857, %v860
        %v1074 = vld [vmem:[%s172] sm:$0xff]
        %v1076 = vcombine.high %v1074, %v1074
        %1078 = vmatprep.subr.mxu0 %v1010
        %1079 = vmatpush1.msra.mxu0 %v1009
        %1080 = vmatprep.subr.mxu0 %v1012
        %1081 = vmatpush1.msra.mxu0 %v1011
        %1082 = vmatprep.subr.mxu0 %v1014
        %1083 = vmatpush1.msra.mxu0 %v1013
        %1084 = vmatprep.subr.mxu0 %v1016
        %1085 = vmatpush1.msra.mxu0 %v1015
        %1086 = vmatprep.subr.mxu0 %v1018
        %1087 = vmatpush1.msra.mxu0 %v1017
        %1088 = vmatprep.subr.mxu0 %v1020
        %1089 = vmatpush1.msra.mxu0 %v1019
        %1090 = vmatprep.subr.mxu0 %v1022
        %1091 = vmatpush1.msra.mxu0 %v1021
        %1092 = vmatprep.subr.mxu0 %v1024
        %1093 = vmatpush1.msra.mxu0 %v1023
        %1094 = vmatprep.subr.mxu0 %v1026
        %1095 = vmatpush1.msra.mxu0 %v1025
        %1096 = vmatprep.subr.mxu0 %v1028
        %1097 = vmatpush1.msra.mxu0 %v1027
        %1098 = vmatprep.subr.mxu0 %v1030
        %1099 = vmatpush1.msra.mxu0 %v1029
        %1100 = vmatprep.subr.mxu0 %v1032
        %1101 = vmatpush1.msra.mxu0 %v1031
        %1102 = vmatprep.subr.mxu0 %v1034
        %1103 = vmatpush1.msra.mxu0 %v1033
        %1104 = vmatprep.subr.mxu0 %v1036
        %1105 = vmatpush1.msra.mxu0 %v1035
        %1106 = vmatprep.subr.mxu0 %v1038
        %1107 = vmatpush1.msra.mxu0 %v1037
        %1108 = vmatprep.subr.mxu0 %v1040
        %1109 = vmatpush1.msra.mxu0 %v1039
        %1110 = vmatprep.subr.mxu0 %v1042
        %1111 = vmatpush1.msra.mxu0 %v1041
        %1112 = vmatprep.subr.mxu0 %v1044
        %1113 = vmatpush1.msra.mxu0 %v1043
        %1114 = vmatprep.subr.mxu0 %v1046
        %1115 = vmatpush1.msra.mxu0 %v1045
        %1116 = vmatprep.subr.mxu0 %v1048
        %1117 = vmatpush1.msra.mxu0 %v1047
        %1118 = vmatprep.subr.mxu0 %v1050
        %1119 = vmatpush1.msra.mxu0 %v1049
        %1120 = vmatprep.subr.mxu0 %v1052
        %1121 = vmatpush1.msra.mxu0 %v1051
        %1122 = vmatprep.subr.mxu0 %v1054
        %1123 = vmatpush1.msra.mxu0 %v1053
        %1124 = vmatprep.subr.mxu0 %v1056
        %1125 = vmatpush1.msra.mxu0 %v1055
        %1126 = vmatprep.subr.mxu0 %v1058
        %1127 = vmatpush1.msra.mxu0 %v1057
        %1128 = vmatprep.subr.mxu0 %v1060
        %1129 = vmatpush1.msra.mxu0 %v1059
        %1130 = vmatprep.subr.mxu0 %v1062
        %1131 = vmatpush1.msra.mxu0 %v1061
        %1132 = vmatprep.subr.mxu0 %v1064
        %1133 = vmatpush1.msra.mxu0 %v1063
        %1134 = vmatprep.subr.mxu0 %v1066
        %1135 = vmatpush1.msra.mxu0 %v1065
        %1136 = vmatprep.subr.mxu0 %v1068
        %1137 = vmatpush1.msra.mxu0 %v1067
        %1138 = vmatprep.subr.mxu0 %v1070
        %1139 = vmatpush1.msra.mxu0 %v1069
        %1140 = vmatprep.subr.mxu0 %v1072
        %1141 = vmatpush1.msra.mxu0 %v1071
        %1142 = vmatprep.mubr.f32.mxu0 %v1076
        %1143 = vmatmul.mubr.f32.gmra.mrb[0].mxu0 %v1074
        %v1144 = vpop.f32.mrb[0].mxu0
        %v1145 = vadd.f32 0.0, %v1144
        %v1146 = vpop.f32.mrb[0].mxu0
        %v1147 = vadd.f32 0.0, %v1146
        %1148 = vdwg.mxu0
        %v1149 = vmul.f32 %v1073, %v181
        %v1151 = vlaneseq
        %v1152 = vshrl.u32 %v1151, 7
        %v1153 = vsub.s32 0, %v1152
        %v1154 = vrot.slane %v1149, %v1153
        %v1155 = vlaneseq
        %v1156 = vshrl.u32 %v1155, 7
        %v1157 = vsub.s32 1, %v1156
        %v1158 = vrot.slane %v1149, %v1157
        %v1161 = vmul.f32 %v1145, %v1154
        %v1162 = vmul.f32 %v1147, %v1158
        %v1165 = vcombine.low %v1161, %v1162
        %1167 = vst [vmem:[%s167] sm:$0xff] %v1165
        %s1168 = sand.u32 %s90, 1
        %s1169 = scalar_lea.sflag [#allocation9], %s1168
        %s1170 = sand.u32 %s90, 1
        %s1171 = smul.addr %s1170, 8
        %s1172 = scalar_lea.vmem [#allocation10], %s1171
        // Predicated region
        $region33: #{tpu_custom_call.1} parent=27 // pred_check
          %p1173 = pneg %p100
        $region34: #{tpu_custom_call.1} parent=27 // pred_check_branch
          %1175 = sbr.rel (%p1173) target = $region36
        $region35: #{tpu_custom_call.1} parent=27 // pred_region
          %s1177 = ssub.s32 128, 128
          %1178 = vsyncadd %s1169, %s1177
          %s1179 = smul.addr %s35, 2
          %s1180 = smul.addr %s1179, 64
          %s1181 = scalar_lea.hbm %s6, %s1180
          %s1183 = sshll.u32 %s1172, 4
          %s1184 = int_to_ptr.vmem [resolvable:$true] %s1183
          %1186 = dma.vmem_to_hbm [thread:$0]  %s1184, 128, %s1181, %s1169
        $region36: #{tpu_custom_call.1} parent=27 // pred_fallthru
          _
      $region28: #{tpu_custom_call.1} parent=5 // pred_fallthru
        _
      %p1187 = scmp.le.s32.totalorder 2, %s30
      // Predicated region
      $region37: #{tpu_custom_call.1} parent=5 // pred_check
        %p1188 = pneg %p1187
      $region38: #{tpu_custom_call.1} parent=5 // pred_check_branch
        %1190 = sbr.rel (%p1188) target = $region40
      $region39: #{tpu_custom_call.1} parent=5 // pred_region
        %s1191 = ssub.s32 %s30, 2
        // Predicated region
        $region41: #{tpu_custom_call.1} parent=39 // pred_check
          %p1192 = pneg %p106
        $region42: #{tpu_custom_call.1} parent=39 // pred_check_branch
          %1194 = sbr.rel (%p1192) target = $region44
        $region43: #{tpu_custom_call.1} parent=39 // pred_region
          %s1195 = sand.u32 %s91, 1
          %s1196 = scalar_lea.sflag [#allocation9], %s1195
          %s1197 = sand.u32 %s91, 1
          %s1198 = smul.addr %s1197, 8
          %s1199 = scalar_lea.vmem [#allocation10], %s1198
          %1200 = dma.done %s1196, 128
        $region44: #{tpu_custom_call.1} parent=39 // pred_fallthru
          _
      $region40: #{tpu_custom_call.1} parent=5 // pred_fallthru
        _
    $region6: #{tpu_custom_call.1} parent=1 // loop_footer
      %s34 = sadd.s32 1, %s30
    $region7: #{tpu_custom_call.1} parent=1 // loop_footer_branch
      %29 = sbr.rel target = $region3
    $region8: #{tpu_custom_call.1} parent=1 // loop_exit
      _
    %1201 = vsyncpa [#allocation8], 1
    %s1202 = scalar_lea.sflag [#allocation8], 1
    %1203 = vsyncpa %s1202, 1
    %1204 = vsyncpa [#allocation9], 1
    %s1205 = scalar_lea.sflag [#allocation9], 1
    %1206 = vsyncpa %s1205, 1

</llo_original>
